<compile_context>
chip_gen: v6e
topology: v6e:2x2x1
jax: 0.10.0
libtpu: 0.0.40
codegen_flags: <defaults>
</compile_context>

<pallas_src>
import jax
import jax.numpy as jnp
from jax.experimental import pallas as pl
from jax.experimental.pallas import tpu as pltpu

_H = 64  # hidden width hard-coded by the reference module


# ------------------------------- kernels ---------------------------------------------------

def _critic_mlp_feature_major(x_ref, w1_ref, b1_ref, w2_ref, b2_ref, w3_ref, b3_ref):
    """Shared body: returns layer-3 pre-activation in feature-major (d_out_rows, tb) form."""
    # In-kernel cast (no-op for f32): bf16 MXU inputs without an extra HBM pass over obs.
    x = x_ref[...].astype(w1_ref.dtype)                      # (tb, d_in)

    # Layer 1: W1 @ x^T -> (H, tb); batch on the 128-lane axis.
    # NOTE: Mosaic presents x as (d_in, tb) to the MXU (implicit XLU transpose of the obs
    # tile). For d_in ~ 32 this is far below the EUP/HBM bound; for much larger input_dim a
    # caller-provided (d_in, B) obs layout would remove it.
    z1 = jax.lax.dot_general(w1_ref[...], x, (((1,), (1,)), ((), ())),
                             preferred_element_type=jnp.float32)
    h1 = jnp.tanh(z1 + b1_ref[...]).astype(w2_ref.dtype)      # bias (H,1) broadcast over lanes

    # Layer 2: (H, H) @ (H, tb) -> (H, tb)
    z2 = jnp.dot(w2_ref[...], h1, preferred_element_type=jnp.float32)
    h2 = jnp.tanh(z2 + b2_ref[...]).astype(w3_ref.dtype)

    # Layer 3: (d_out_rows, H) @ (H, tb) -> (d_out_rows, tb)
    z3 = jnp.dot(w3_ref[...], h2, preferred_element_type=jnp.float32)
    return z3 + b3_ref[...]


def _critic_kernel_bm(x_ref, w1_ref, b1_ref, w2_ref, b2_ref, w3_ref, b3_ref, o_ref):
    """Batch-major output: in-kernel transpose of the small (8-padded, tb) result."""
    y = _critic_mlp_feature_major(x_ref, w1_ref, b1_ref, w2_ref, b2_ref, w3_ref, b3_ref)
    d_out = o_ref.shape[-1]
    # (d_out_pad, tb) -> (tb, d_out_pad): a few XLU vreg transposes per tile (source is
    # natively (8,128)-tiled thanks to the 8-row padding), then slice the real outputs.
    o_ref[...] = y.T[:, :d_out].astype(o_ref.dtype)


def _critic_kernel_fm(x_ref, w1_ref, b1_ref, w2_ref, b2_ref, w3_ref, b3_ref, o_ref):
    """Feature-major output (fallback): lane-dense (d_out, tb) block; wrapper transposes."""
    y = _critic_mlp_feature_major(x_ref, w1_ref, b1_ref, w2_ref, b2_ref, w3_ref, b3_ref)
    o_ref[...] = y.astype(o_ref.dtype)


# ------------------------------- tiling / VMEM budgeting -----------------------------------

def _bytes_per_row(d_in, d_out, obs_itemsize):
    # double-buffered obs tile + double-buffered out tile
    # + ~6 live (H, tb) f32 intermediates (z1/h1/z2/h2/y) + transposed (tb, 8) f32 result.
    return 2 * d_in * obs_itemsize + 2 * d_out * 4 + 6 * _H * 4 + 8 * 4


def _pick_batch_tile(B, d_in, d_out, obs_itemsize,
                     vmem_budget_bytes=40 * 1024 * 1024, max_tile=16384):
    """Largest batch tile that fits the VMEM budget, is a multiple of 128, divides B, and
    leaves >=2 grid steps when the batch allows it (pipelining; 2 TCs on v7x)."""
    target = (vmem_budget_bytes // _bytes_per_row(d_in, d_out, obs_itemsize)) // 128 * 128
    target = max(128, min(max_tile, target))
    if B % 128 == 0:
        t = min(target, B // 2 if B >= 256 else B)
        t -= t % 128
        while t >= 128:
            if B % t == 0:
                return t
            t -= 128
    return B  # small / awkward batch: single full tile (still correct)


# ------------------------------- pallas_call wrapper ---------------------------------------

def _critic_pallas(obs, w1, b1, w2, b2, w3, b3, *, tb, d_out, batch_major_out):
    B, d_in = obs.shape
    d_out_rows = w3.shape[0]
    grid = (B // tb,)

    rep = lambda shape: pl.BlockSpec(shape, lambda i: (0, 0))  # resident weights/biases
    in_specs = [
        pl.BlockSpec((tb, d_in), lambda i: (i, 0)),            # obs tile (pipelined)
        rep((_H, d_in)), rep((_H, 1)),                          # W1, b1
        rep((_H, _H)), rep((_H, 1)),                            # W2, b2
        rep((d_out_rows, _H)), rep((d_out_rows, 1)),            # W3, b3
    ]
    if batch_major_out:
        out_shape = jax.ShapeDtypeStruct((B, d_out), jnp.float32)
        out_specs = pl.BlockSpec((tb, d_out), lambda i: (i, 0))
        kernel = _critic_kernel_bm
    else:
        out_shape = jax.ShapeDtypeStruct((d_out_rows, B), jnp.float32)
        out_specs = pl.BlockSpec((d_out_rows, tb), lambda i: (0, i))
        kernel = _critic_kernel_fm

    weight_bytes = sum(a.size * a.dtype.itemsize for a in (w1, b1, w2, b2, w3, b3))
    vmem_needed = tb * _bytes_per_row(d_in, d_out, obs.dtype.itemsize) + weight_bytes
    # v7x has only 64 MiB physical VMEM -> cap the scoped limit at 48 MiB (tb is budgeted to
    # ~40 MiB above); v5e/v6e (128 MiB) are comfortably inside this too.
    vmem_limit = int(min(48 * 1024 * 1024, max(32 * 1024 * 1024, (vmem_needed * 3) // 2)))

    flops = 2 * B * (d_in * _H + _H * _H + _H * d_out_rows)
    transcendentals = 2 * _H * B
    bytes_accessed = (obs.size * obs.dtype.itemsize + B * d_out * 4 + weight_bytes)

    return pl.pallas_call(
        kernel,
        out_shape=out_shape,
        grid_spec=pltpu.PrefetchScalarGridSpec(
            num_scalar_prefetch=0,
            grid=grid,
            in_specs=in_specs,
            out_specs=out_specs,
        ),
        compiler_params=pltpu.CompilerParams(
            dimension_semantics=("parallel",),   # batch axis: megacore-shardable on v7x
            vmem_limit_bytes=vmem_limit,
        ),
        cost_estimate=pl.CostEstimate(
            flops=flops,
            transcendentals=transcendentals,
            bytes_accessed=bytes_accessed,
        ),
    )(obs, w1, b1, w2, b2, w3, b3)


# Cache: does the in-kernel (8, tb) -> (tb, 8) transpose lower on this config?
_BM_OUT_OK = {}


def critic_forward(obs, params, *, batch_tile=None, use_bf16=False):
    """Fused MLP forward. obs: (B, input_dim) -> (B, output_dim) float32."""
    w1, b1, w2, b2, w3, b3 = params
    B, d_in = obs.shape
    d_out = w3.shape[0]
    assert w1.shape == (_H, d_in) and w2.shape == (_H, _H) and w3.shape == (d_out, _H)

    if use_bf16:
        # Cast only the (tiny) weights here; obs is cast in-kernel right before the MXU so
        # HBM traffic is unchanged (the old wrapper-side obs cast added a full extra pass).
        # NOTE: bf16 rounding (~1e-2 relative) cannot meet a 1e-5 tolerance by construction.
        w1, w2, w3 = (w.astype(jnp.bfloat16) for w in (w1, w2, w3))

    tb = batch_tile if batch_tile is not None else _pick_batch_tile(
        B, d_in, d_out, obs.dtype.itemsize)
    assert B % tb == 0, "batch must be divisible by batch_tile"
    if tb != B:
        assert tb % 128 == 0, "batch_tile must be a multiple of 128 (or equal to B)"

    key = (d_in, d_out, str(jnp.dtype(w1.dtype)))
    use_bm = (tb % 128 == 0) and _BM_OUT_OK.get(key, True)

    if use_bm:
        # Pad W3/b3 rows to a multiple of 8 (>=8) so the layer-3 result is natively
        # (8,128)-tiled before the in-kernel transpose; padded rows are sliced off in-kernel.
        d_out_p = max(8, ((d_out + 7) // 8) * 8)
        if d_out_p != d_out:
            w3p = jnp.zeros((d_out_p, _H), w3.dtype).at[:d_out].set(w3)
            b3p = jnp.zeros((d_out_p, 1), b3.dtype).at[:d_out].set(b3)
        else:
            w3p, b3p = w3, b3
        known_ok = key in _BM_OUT_OK
        try:
            out = _critic_pallas(obs, w1, b1, w2, b2, w3p, b3p,
                                 tb=tb, d_out=d_out, batch_major_out=True)
            if not known_ok:
                jax.block_until_ready(out)   # surface Mosaic lowering errors eagerly
                _BM_OUT_OK[key] = True
            return out
        except Exception:
            _BM_OUT_OK[key] = False          # fall back to feature-major output below

    # Fallback: lane-dense (d_out, B) output + tiny XLA transpose back to (B, d_out).
    out_t = _critic_pallas(obs, w1, b1, w2, b2, w3, b3,
                           tb=tb, d_out=d_out, batch_major_out=False)
    return out_t.T


# ------------------------------- params / reference ----------------------------------------

def init_critic_params(key, input_dim, output_dim, hidden_size=64):
    """PyTorch-layout params: W (out_features, in_features), b (out_features, 1).
    Mimics nn.Linear default init (uniform +/- 1/sqrt(fan_in))."""
    del hidden_size  # the reference module hard-codes 64 regardless of hidden_size

    def linear_init(k, fan_in, fan_out):
        kw, kb = jax.random.split(k)
        bound = 1.0 / (fan_in ** 0.5)
        w = jax.random.uniform(kw, (fan_out, fan_in), jnp.float32, -bound, bound)
        b = jax.random.uniform(kb, (fan_out, 1), jnp.float32, -bound, bound)
        return w, b

    k1, k2, k3 = jax.random.split(key, 3)
    w1, b1 = linear_init(k1, input_dim, _H)
    w2, b2 = linear_init(k2, _H, _H)
    w3, b3 = linear_init(k3, _H, output_dim)
    return (w1, b1, w2, b2, w3, b3)


def critic_ref(obs, params):
    """Pure-JAX reference of the same forward (PyTorch weight layout)."""
    w1, b1, w2, b2, w3, b3 = params
    h1 = jnp.tanh(obs @ w1.T + b1[:, 0])
    h2 = jnp.tanh(h1 @ w2.T + b2[:, 0])
    return h2 @ w3.T + b3[:, 0]


if __name__ == "__main__":
    key = jax.random.PRNGKey(0)
    k_obs, k_params = jax.random.split(key)

    input_dim, output_dim = 32, 4
    params = init_critic_params(k_params, input_dim, output_dim)

    # Multi-tile case: B=256 -> tb=128, grid=(2,): pipelined tiles + parallel batch axis.
    obs = jax.random.normal(k_obs, (256, input_dim), jnp.float32)
    out = jax.block_until_ready(critic_forward(obs, params))
    ref = critic_ref(obs, params)
    assert out.shape == (256, output_dim)
    assert jnp.allclose(out, ref, atol=1e-5, rtol=1e-5), "mismatch vs JAX reference (B=256)"

    # Tiny single-tile fallback path (B < 128 -> tb=B, grid=(1,)).
    obs_small = jax.random.normal(k_obs, (8, input_dim), jnp.float32)
    out_small = jax.block_until_ready(critic_forward(obs_small, params))
    assert out_small.shape == (8, output_dim)
    assert jnp.allclose(out_small, critic_ref(obs_small, params), atol=1e-5, rtol=1e-5), \
        "mismatch vs JAX reference (B=8)"

    # bf16-MXU-input path (weights bf16, obs cast in-kernel): smoke test only — bf16
    # rounding cannot meet the 1e-5 f32 tolerance by construction.
    out_bf16 = jax.block_until_ready(critic_forward(obs, params, use_bf16=True))
    assert out_bf16.shape == (256, output_dim)
    assert bool(jnp.all(jnp.isfinite(out_bf16)))

    print("KERNEL_OK")
</pallas_src>

<mosaic_0001>
module attributes {stable_mosaic.version = 11 : i64} {
  func.func @_critic_kernel_bm(%arg0: i32, %arg1: memref<128x32xf32, #tpu.memory_space<vmem>>, %arg2: memref<64x32xf32, #tpu.memory_space<vmem>>, %arg3: memref<64x1xf32, #tpu.memory_space<vmem>>, %arg4: memref<64x64xf32, #tpu.memory_space<vmem>>, %arg5: memref<64x1xf32, #tpu.memory_space<vmem>>, %arg6: memref<8x64xf32, #tpu.memory_space<vmem>>, %arg7: memref<8x1xf32, #tpu.memory_space<vmem>>, %arg8: memref<128x4xf32, #tpu.memory_space<vmem>>) attributes {dimension_semantics = [#tpu.dimension_semantics<parallel>], iteration_bounds = array<i64: 2>, scalar_prefetch = 0 : i64, scratch_operands = 0 : i64, tpu.core_type = #tpu.core_type<tc>, window_params = [{transform_indices = @transform_0, window_bounds = array<i64: 128, 32>}, {pipeline_mode = #tpu.pipeline_mode<synchronous>, transform_indices = @transform_1, window_bounds = array<i64: 64, 32>}, {pipeline_mode = #tpu.pipeline_mode<synchronous>, transform_indices = @transform_2, window_bounds = array<i64: 64, 1>}, {pipeline_mode = #tpu.pipeline_mode<synchronous>, transform_indices = @transform_3, window_bounds = array<i64: 64, 64>}, {pipeline_mode = #tpu.pipeline_mode<synchronous>, transform_indices = @transform_4, window_bounds = array<i64: 64, 1>}, {pipeline_mode = #tpu.pipeline_mode<synchronous>, transform_indices = @transform_5, window_bounds = array<i64: 8, 64>}, {pipeline_mode = #tpu.pipeline_mode<synchronous>, transform_indices = @transform_6, window_bounds = array<i64: 8, 1>}, {transform_indices = @transform_7, window_bounds = array<i64: 128, 4>}]} {
    %c0 = arith.constant 0 : index
    %c0_0 = arith.constant 0 : index
    %0 = vector.load %arg1[%c0, %c0_0] : memref<128x32xf32, #tpu.memory_space<vmem>>, vector<128x32xf32>
    %c0_1 = arith.constant 0 : index
    %c0_2 = arith.constant 0 : index
    %1 = vector.load %arg2[%c0_1, %c0_2] : memref<64x32xf32, #tpu.memory_space<vmem>>, vector<64x32xf32>
    %cst = arith.constant dense<0.000000e+00> : vector<64x128xf32>
    %2 = tpu.matmul %1, %0, %cst {dimension_numbers = #tpu.dot_dimension_numbers<[1], [1], [0], [0], [0, 0, 1, 0], [], []>} : vector<64x32xf32>, vector<128x32xf32>, vector<64x128xf32> -> vector<64x128xf32>
    %c0_3 = arith.constant 0 : index
    %c0_4 = arith.constant 0 : index
    %3 = vector.load %arg3[%c0_3, %c0_4] : memref<64x1xf32, #tpu.memory_space<vmem>>, vector<64x1xf32>
    %4 = vector.broadcast %3 : vector<64x1xf32> to vector<64x128xf32>
    %5 = arith.addf %2, %4 : vector<64x128xf32>
    %6 = math.tanh %5 : vector<64x128xf32>
    %c0_5 = arith.constant 0 : index
    %c0_6 = arith.constant 0 : index
    %7 = vector.load %arg4[%c0_5, %c0_6] : memref<64x64xf32, #tpu.memory_space<vmem>>, vector<64x64xf32>
    %cst_7 = arith.constant dense<0.000000e+00> : vector<64x128xf32>
    %8 = tpu.matmul %7, %6, %cst_7 {dimension_numbers = #tpu.dot_dimension_numbers<[1], [0], [0], [1], [0, 0, 1, 1], [], []>} : vector<64x64xf32>, vector<64x128xf32>, vector<64x128xf32> -> vector<64x128xf32>
    %c0_8 = arith.constant 0 : index
    %c0_9 = arith.constant 0 : index
    %9 = vector.load %arg5[%c0_8, %c0_9] : memref<64x1xf32, #tpu.memory_space<vmem>>, vector<64x1xf32>
    %10 = vector.broadcast %9 : vector<64x1xf32> to vector<64x128xf32>
    %11 = arith.addf %8, %10 : vector<64x128xf32>
    %12 = math.tanh %11 : vector<64x128xf32>
    %c0_10 = arith.constant 0 : index
    %c0_11 = arith.constant 0 : index
    %13 = vector.load %arg6[%c0_10, %c0_11] : memref<8x64xf32, #tpu.memory_space<vmem>>, vector<8x64xf32>
    %cst_12 = arith.constant dense<0.000000e+00> : vector<8x128xf32>
    %14 = tpu.matmul %13, %12, %cst_12 {dimension_numbers = #tpu.dot_dimension_numbers<[1], [0], [0], [1], [0, 0, 1, 1], [], []>} : vector<8x64xf32>, vector<64x128xf32>, vector<8x128xf32> -> vector<8x128xf32>
    %c0_13 = arith.constant 0 : index
    %c0_14 = arith.constant 0 : index
    %15 = vector.load %arg7[%c0_13, %c0_14] : memref<8x1xf32, #tpu.memory_space<vmem>>, vector<8x1xf32>
    %16 = vector.broadcast %15 : vector<8x1xf32> to vector<8x128xf32>
    %17 = arith.addf %14, %16 : vector<8x128xf32>
    %18 = tpu.transpose %17, [1, 0] : vector<8x128xf32> -> vector<128x8xf32>
    %19 = vector.extract_strided_slice %18 {offsets = [0, 0], sizes = [128, 4], strides = [1, 1]} : vector<128x8xf32> to vector<128x4xf32>
    %c0_15 = arith.constant 0 : index
    %c0_16 = arith.constant 0 : index
    %20 = vector.load %arg8[%c0_15, %c0_16] : memref<128x4xf32, #tpu.memory_space<vmem>>, vector<128x4xf32>
    tpu.vector_store %arg8[%c0_15, %c0_16], %19 {strides = array<i32>} : memref<128x4xf32, #tpu.memory_space<vmem>>, vector<128x4xf32>,
    return
  }
  func.func @transform_0(%arg0: i32) -> (i32, i32) {
    %c0_i32 = arith.constant 0 : i32
    %c0_i32_0 = arith.constant 0 : i32
    return %arg0, %c0_i32 : i32, i32
  }
  func.func @transform_1(%arg0: i32) -> (i32, i32) {
    %c0_i32 = arith.constant 0 : i32
    %c0_i32_0 = arith.constant 0 : i32
    %c0_i32_1 = arith.constant 0 : i32
    return %c0_i32, %c0_i32_0 : i32, i32
  }
  func.func @transform_2(%arg0: i32) -> (i32, i32) {
    %c0_i32 = arith.constant 0 : i32
    %c0_i32_0 = arith.constant 0 : i32
    %c0_i32_1 = arith.constant 0 : i32
    return %c0_i32, %c0_i32_0 : i32, i32
  }
  func.func @transform_3(%arg0: i32) -> (i32, i32) {
    %c0_i32 = arith.constant 0 : i32
    %c0_i32_0 = arith.constant 0 : i32
    %c0_i32_1 = arith.constant 0 : i32
    return %c0_i32, %c0_i32_0 : i32, i32
  }
  func.func @transform_4(%arg0: i32) -> (i32, i32) {
    %c0_i32 = arith.constant 0 : i32
    %c0_i32_0 = arith.constant 0 : i32
    %c0_i32_1 = arith.constant 0 : i32
    return %c0_i32, %c0_i32_0 : i32, i32
  }
  func.func @transform_5(%arg0: i32) -> (i32, i32) {
    %c0_i32 = arith.constant 0 : i32
    %c0_i32_0 = arith.constant 0 : i32
    %c0_i32_1 = arith.constant 0 : i32
    return %c0_i32, %c0_i32_0 : i32, i32
  }
  func.func @transform_6(%arg0: i32) -> (i32, i32) {
    %c0_i32 = arith.constant 0 : i32
    %c0_i32_0 = arith.constant 0 : i32
    %c0_i32_1 = arith.constant 0 : i32
    return %c0_i32, %c0_i32_0 : i32, i32
  }
  func.func @transform_7(%arg0: i32) -> (i32, i32) {
    %c0_i32 = arith.constant 0 : i32
    %c0_i32_0 = arith.constant 0 : i32
    return %arg0, %c0_i32 : i32, i32
  }
}

module attributes {stable_mosaic.version = 11 : i64} {
  func.func @_critic_kernel_fm(%arg0: i32, %arg1: memref<128x32xf32, #tpu.memory_space<vmem>>, %arg2: memref<64x32xf32, #tpu.memory_space<vmem>>, %arg3: memref<64x1xf32, #tpu.memory_space<vmem>>, %arg4: memref<64x64xf32, #tpu.memory_space<vmem>>, %arg5: memref<64x1xf32, #tpu.memory_space<vmem>>, %arg6: memref<4x64xf32, #tpu.memory_space<vmem>>, %arg7: memref<4x1xf32, #tpu.memory_space<vmem>>, %arg8: memref<4x128xf32, #tpu.memory_space<vmem>>) attributes {dimension_semantics = [#tpu.dimension_semantics<parallel>], iteration_bounds = array<i64: 2>, scalar_prefetch = 0 : i64, scratch_operands = 0 : i64, tpu.core_type = #tpu.core_type<tc>, window_params = [{transform_indices = @transform_0, window_bounds = array<i64: 128, 32>}, {pipeline_mode = #tpu.pipeline_mode<synchronous>, transform_indices = @transform_1, window_bounds = array<i64: 64, 32>}, {pipeline_mode = #tpu.pipeline_mode<synchronous>, transform_indices = @transform_2, window_bounds = array<i64: 64, 1>}, {pipeline_mode = #tpu.pipeline_mode<synchronous>, transform_indices = @transform_3, window_bounds = array<i64: 64, 64>}, {pipeline_mode = #tpu.pipeline_mode<synchronous>, transform_indices = @transform_4, window_bounds = array<i64: 64, 1>}, {pipeline_mode = #tpu.pipeline_mode<synchronous>, transform_indices = @transform_5, window_bounds = array<i64: 4, 64>}, {pipeline_mode = #tpu.pipeline_mode<synchronous>, transform_indices = @transform_6, window_bounds = array<i64: 4, 1>}, {transform_indices = @transform_7, window_bounds = array<i64: 4, 128>}]} {
    %c0 = arith.constant 0 : index
    %c0_0 = arith.constant 0 : index
    %0 = vector.load %arg1[%c0, %c0_0] : memref<128x32xf32, #tpu.memory_space<vmem>>, vector<128x32xf32>
    %c0_1 = arith.constant 0 : index
    %c0_2 = arith.constant 0 : index
    %1 = vector.load %arg2[%c0_1, %c0_2] : memref<64x32xf32, #tpu.memory_space<vmem>>, vector<64x32xf32>
    %cst = arith.constant dense<0.000000e+00> : vector<64x128xf32>
    %2 = tpu.matmul %1, %0, %cst {dimension_numbers = #tpu.dot_dimension_numbers<[1], [1], [0], [0], [0, 0, 1, 0], [], []>} : vector<64x32xf32>, vector<128x32xf32>, vector<64x128xf32> -> vector<64x128xf32>
    %c0_3 = arith.constant 0 : index
    %c0_4 = arith.constant 0 : index
    %3 = vector.load %arg3[%c0_3, %c0_4] : memref<64x1xf32, #tpu.memory_space<vmem>>, vector<64x1xf32>
    %4 = vector.broadcast %3 : vector<64x1xf32> to vector<64x128xf32>
    %5 = arith.addf %2, %4 : vector<64x128xf32>
    %6 = math.tanh %5 : vector<64x128xf32>
    %c0_5 = arith.constant 0 : index
    %c0_6 = arith.constant 0 : index
    %7 = vector.load %arg4[%c0_5, %c0_6] : memref<64x64xf32, #tpu.memory_space<vmem>>, vector<64x64xf32>
    %cst_7 = arith.constant dense<0.000000e+00> : vector<64x128xf32>
    %8 = tpu.matmul %7, %6, %cst_7 {dimension_numbers = #tpu.dot_dimension_numbers<[1], [0], [0], [1], [0, 0, 1, 1], [], []>} : vector<64x64xf32>, vector<64x128xf32>, vector<64x128xf32> -> vector<64x128xf32>
    %c0_8 = arith.constant 0 : index
    %c0_9 = arith.constant 0 : index
    %9 = vector.load %arg5[%c0_8, %c0_9] : memref<64x1xf32, #tpu.memory_space<vmem>>, vector<64x1xf32>
    %10 = vector.broadcast %9 : vector<64x1xf32> to vector<64x128xf32>
    %11 = arith.addf %8, %10 : vector<64x128xf32>
    %12 = math.tanh %11 : vector<64x128xf32>
    %c0_10 = arith.constant 0 : index
    %c0_11 = arith.constant 0 : index
    %13 = vector.load %arg6[%c0_10, %c0_11] : memref<4x64xf32, #tpu.memory_space<vmem>>, vector<4x64xf32>
    %cst_12 = arith.constant dense<0.000000e+00> : vector<4x128xf32>
    %14 = tpu.matmul %13, %12, %cst_12 {dimension_numbers = #tpu.dot_dimension_numbers<[1], [0], [0], [1], [0, 0, 1, 1], [], []>} : vector<4x64xf32>, vector<64x128xf32>, vector<4x128xf32> -> vector<4x128xf32>
    %c0_13 = arith.constant 0 : index
    %c0_14 = arith.constant 0 : index
    %15 = vector.load %arg7[%c0_13, %c0_14] : memref<4x1xf32, #tpu.memory_space<vmem>>, vector<4x1xf32>
    %16 = vector.broadcast %15 : vector<4x1xf32> to vector<4x128xf32>
    %17 = arith.addf %14, %16 : vector<4x128xf32>
    %c0_15 = arith.constant 0 : index
    %c0_16 = arith.constant 0 : index
    %18 = vector.load %arg8[%c0_15, %c0_16] : memref<4x128xf32, #tpu.memory_space<vmem>>, vector<4x128xf32>
    tpu.vector_store %arg8[%c0_15, %c0_16], %17 {strides = array<i32>} : memref<4x128xf32, #tpu.memory_space<vmem>>, vector<4x128xf32>,
    return
  }
  func.func @transform_0(%arg0: i32) -> (i32, i32) {
    %c0_i32 = arith.constant 0 : i32
    %c0_i32_0 = arith.constant 0 : i32
    return %arg0, %c0_i32 : i32, i32
  }
  func.func @transform_1(%arg0: i32) -> (i32, i32) {
    %c0_i32 = arith.constant 0 : i32
    %c0_i32_0 = arith.constant 0 : i32
    %c0_i32_1 = arith.constant 0 : i32
    return %c0_i32, %c0_i32_0 : i32, i32
  }
  func.func @transform_2(%arg0: i32) -> (i32, i32) {
    %c0_i32 = arith.constant 0 : i32
    %c0_i32_0 = arith.constant 0 : i32
    %c0_i32_1 = arith.constant 0 : i32
    return %c0_i32, %c0_i32_0 : i32, i32
  }
  func.func @transform_3(%arg0: i32) -> (i32, i32) {
    %c0_i32 = arith.constant 0 : i32
    %c0_i32_0 = arith.constant 0 : i32
    %c0_i32_1 = arith.constant 0 : i32
    return %c0_i32, %c0_i32_0 : i32, i32
  }
  func.func @transform_4(%arg0: i32) -> (i32, i32) {
    %c0_i32 = arith.constant 0 : i32
    %c0_i32_0 = arith.constant 0 : i32
    %c0_i32_1 = arith.constant 0 : i32
    return %c0_i32, %c0_i32_0 : i32, i32
  }
  func.func @transform_5(%arg0: i32) -> (i32, i32) {
    %c0_i32 = arith.constant 0 : i32
    %c0_i32_0 = arith.constant 0 : i32
    %c0_i32_1 = arith.constant 0 : i32
    return %c0_i32, %c0_i32_0 : i32, i32
  }
  func.func @transform_6(%arg0: i32) -> (i32, i32) {
    %c0_i32 = arith.constant 0 : i32
    %c0_i32_0 = arith.constant 0 : i32
    %c0_i32_1 = arith.constant 0 : i32
    return %c0_i32, %c0_i32_0 : i32, i32
  }
  func.func @transform_7(%arg0: i32) -> (i32, i32) {
    %c0_i32 = arith.constant 0 : i32
    %c0_i32_0 = arith.constant 0 : i32
    return %c0_i32, %arg0 : i32, i32
  }
}

</mosaic_0001>

<llo_original>
// kernel: tpu_custom_call.1
$region0: #{tpu_custom_call.1}
  #allocation0 [shape = 'u32[]', space=smem, size = 0x4, offset = 0x4, fixed_abs, tag = 'smem constant byte address 0x4 - core index']
  #allocation1 [shape = 'u32[144,128]{1,0:T(1,128)}', space=vmem, size = 0x12000, scoped, tag = 'internal scratch']
  %s0 = inlined_call_operand.vmem [shape: f32[256,32], index: 0, kind: input, shape index: {}]
  %s1 = inlined_call_operand.vmem [shape: f32[64,32], index: 1, kind: input, shape index: {}]
  %s2 = inlined_call_operand.vmem [shape: f32[64,1], index: 2, kind: input, shape index: {}]
  %s3 = inlined_call_operand.vmem [shape: f32[64,64], index: 3, kind: input, shape index: {}]
  %s4 = inlined_call_operand.vmem [shape: f32[64,1], index: 4, kind: input, shape index: {}]
  %s5 = inlined_call_operand.vmem [shape: f32[8,64], index: 5, kind: input, shape index: {}]
  %s6 = inlined_call_operand.vmem [shape: f32[8,1], index: 6, kind: input, shape index: {}]
  %s7 = inlined_call_operand.vmem [shape: f32[256,4], index: 7, kind: output, shape index: {}]
  %s8 = sld [smem:[#allocation0]]
  $region61: #{tpu_custom_call.1} parent=0
    _
  %s10 = ssub.s32 1, %s8
  %s11 = scalar_select 0, %s10, %s8
  loop: start=0, step=1, limit=4
  $region2: #{tpu_custom_call.1} parent=0 // loop_pre_header
    _
  $region3: #{tpu_custom_call.1} parent=0 // loop_header
    %s13 = sphi 0, %s17
    %p14 = scmp.ge.s32.totalorder %s13, 4
    %s23 = sphi 0, %s25
    %s26 = sphi 0, %s23
    %s27 = sphi 0, %s26
    %s43 = sphi 0, %s27
    %s47 = sphi 0, %s47
    %s49 = sphi 0, %s47
    %s50 = sphi 0, %s49
    %s64 = sphi 0, %s50
    %s68 = sphi 0, %s68
    %s70 = sphi 0, %s68
    %s71 = sphi 0, %s70
    %s85 = sphi 0, %s71
    %s89 = sphi 0, %s89
    %s91 = sphi 0, %s89
    %s92 = sphi 0, %s91
    %s106 = sphi 0, %s92
    %s110 = sphi 0, %s110
    %s112 = sphi 0, %s110
    %s113 = sphi 0, %s112
    %s127 = sphi 0, %s113
    %s131 = sphi 0, %s131
    %s133 = sphi 0, %s131
    %s134 = sphi 0, %s133
    %s148 = sphi 0, %s134
    %s152 = sphi 0, %s152
    %s154 = sphi 0, %s152
    %s155 = sphi 0, %s154
    %s169 = sphi 0, %s155
    %s175 = sphi 0, %s177
    %s178 = sphi 0, %s175
    %s179 = sphi 0, %s178
    %s195 = sphi 0, %s179
  $region4: #{tpu_custom_call.1} parent=0 // loop_header_branch
    %16 = sbr.rel (%p14) target = $region8
  $region5: #{tpu_custom_call.1} parent=0 // loop_body
    %s18 = ssub.s32 %s13, 1
    %s19 = ssub.s32 %s13, 2
    %s20 = sadd.s32 %s13, 1
    %s21 = ssub.s32 %s13, %s20
    %p22 = scmp.eq.s32.totalorder %s21, 0
    %s24 = sadd.s32 %s23, 1
    %s25 = scalar_select %p22, %s23, %s24
    %p28 = pneg %p22
    %p29 = scmp.eq.s32.totalorder %s13, 1
    %p30 = por %p28, %p29
    %p31 = scmp.ne.s32.totalorder %s23, %s26
    %p32 = scmp.eq.s32.totalorder %s13, 0
    %p33 = por %p31, %p32
    %p34 = scmp.ne.s32.totalorder %s23, %s26
    %p35 = scmp.eq.s32.totalorder %s18, 1
    %p36 = por %p34, %p35
    %p37 = scmp.ne.s32.totalorder %s26, %s27
    %p38 = scmp.eq.s32.totalorder %s18, 0
    %p39 = por %p37, %p38
    %p40 = scmp.ne.s32.totalorder %s26, %s27
    %p41 = scmp.eq.s32.totalorder %s19, 1
    %p42 = por %p40, %p41
    %p44 = scmp.ne.s32.totalorder %s27, %s43
    %p45 = scmp.eq.s32.totalorder %s19, 0
    %p46 = por %p44, %p45
    %s48 = sadd.s32 %s47, 1
    %p51 = scmp.eq.s32.totalorder %s13, 1
    %p52 = scmp.ne.s32.totalorder %s47, %s49
    %p53 = scmp.eq.s32.totalorder %s13, 0
    %p54 = por %p52, %p53
    %p55 = scmp.ne.s32.totalorder %s47, %s49
    %p56 = scmp.eq.s32.totalorder %s18, 1
    %p57 = por %p55, %p56
    %p58 = scmp.ne.s32.totalorder %s49, %s50
    %p59 = scmp.eq.s32.totalorder %s18, 0
    %p60 = por %p58, %p59
    %p61 = scmp.ne.s32.totalorder %s49, %s50
    %p62 = scmp.eq.s32.totalorder %s19, 1
    %p63 = por %p61, %p62
    %p65 = scmp.ne.s32.totalorder %s50, %s64
    %p66 = scmp.eq.s32.totalorder %s19, 0
    %p67 = por %p65, %p66
    %s69 = sadd.s32 %s68, 1
    %p72 = scmp.eq.s32.totalorder %s13, 1
    %p73 = scmp.ne.s32.totalorder %s68, %s70
    %p74 = scmp.eq.s32.totalorder %s13, 0
    %p75 = por %p73, %p74
    %p76 = scmp.ne.s32.totalorder %s68, %s70
    %p77 = scmp.eq.s32.totalorder %s18, 1
    %p78 = por %p76, %p77
    %p79 = scmp.ne.s32.totalorder %s70, %s71
    %p80 = scmp.eq.s32.totalorder %s18, 0
    %p81 = por %p79, %p80
    %p82 = scmp.ne.s32.totalorder %s70, %s71
    %p83 = scmp.eq.s32.totalorder %s19, 1
    %p84 = por %p82, %p83
    %p86 = scmp.ne.s32.totalorder %s71, %s85
    %p87 = scmp.eq.s32.totalorder %s19, 0
    %p88 = por %p86, %p87
    %s90 = sadd.s32 %s89, 1
    %p93 = scmp.eq.s32.totalorder %s13, 1
    %p94 = scmp.ne.s32.totalorder %s89, %s91
    %p95 = scmp.eq.s32.totalorder %s13, 0
    %p96 = por %p94, %p95
    %p97 = scmp.ne.s32.totalorder %s89, %s91
    %p98 = scmp.eq.s32.totalorder %s18, 1
    %p99 = por %p97, %p98
    %p100 = scmp.ne.s32.totalorder %s91, %s92
    %p101 = scmp.eq.s32.totalorder %s18, 0
    %p102 = por %p100, %p101
    %p103 = scmp.ne.s32.totalorder %s91, %s92
    %p104 = scmp.eq.s32.totalorder %s19, 1
    %p105 = por %p103, %p104
    %p107 = scmp.ne.s32.totalorder %s92, %s106
    %p108 = scmp.eq.s32.totalorder %s19, 0
    %p109 = por %p107, %p108
    %s111 = sadd.s32 %s110, 1
    %p114 = scmp.eq.s32.totalorder %s13, 1
    %p115 = scmp.ne.s32.totalorder %s110, %s112
    %p116 = scmp.eq.s32.totalorder %s13, 0
    %p117 = por %p115, %p116
    %p118 = scmp.ne.s32.totalorder %s110, %s112
    %p119 = scmp.eq.s32.totalorder %s18, 1
    %p120 = por %p118, %p119
    %p121 = scmp.ne.s32.totalorder %s112, %s113
    %p122 = scmp.eq.s32.totalorder %s18, 0
    %p123 = por %p121, %p122
    %p124 = scmp.ne.s32.totalorder %s112, %s113
    %p125 = scmp.eq.s32.totalorder %s19, 1
    %p126 = por %p124, %p125
    %p128 = scmp.ne.s32.totalorder %s113, %s127
    %p129 = scmp.eq.s32.totalorder %s19, 0
    %p130 = por %p128, %p129
    %s132 = sadd.s32 %s131, 1
    %p135 = scmp.eq.s32.totalorder %s13, 1
    %p136 = scmp.ne.s32.totalorder %s131, %s133
    %p137 = scmp.eq.s32.totalorder %s13, 0
    %p138 = por %p136, %p137
    %p139 = scmp.ne.s32.totalorder %s131, %s133
    %p140 = scmp.eq.s32.totalorder %s18, 1
    %p141 = por %p139, %p140
    %p142 = scmp.ne.s32.totalorder %s133, %s134
    %p143 = scmp.eq.s32.totalorder %s18, 0
    %p144 = por %p142, %p143
    %p145 = scmp.ne.s32.totalorder %s133, %s134
    %p146 = scmp.eq.s32.totalorder %s19, 1
    %p147 = por %p145, %p146
    %p149 = scmp.ne.s32.totalorder %s134, %s148
    %p150 = scmp.eq.s32.totalorder %s19, 0
    %p151 = por %p149, %p150
    %s153 = sadd.s32 %s152, 1
    %p156 = scmp.eq.s32.totalorder %s13, 1
    %p157 = scmp.ne.s32.totalorder %s152, %s154
    %p158 = scmp.eq.s32.totalorder %s13, 0
    %p159 = por %p157, %p158
    %p160 = scmp.ne.s32.totalorder %s152, %s154
    %p161 = scmp.eq.s32.totalorder %s18, 1
    %p162 = por %p160, %p161
    %p163 = scmp.ne.s32.totalorder %s154, %s155
    %p164 = scmp.eq.s32.totalorder %s18, 0
    %p165 = por %p163, %p164
    %p166 = scmp.ne.s32.totalorder %s154, %s155
    %p167 = scmp.eq.s32.totalorder %s19, 1
    %p168 = por %p166, %p167
    %p170 = scmp.ne.s32.totalorder %s155, %s169
    %p171 = scmp.eq.s32.totalorder %s19, 0
    %p172 = por %p170, %p171
    %s173 = ssub.s32 %s13, %s20
    %p174 = scmp.eq.s32.totalorder %s173, 0
    %s176 = sadd.s32 %s175, 1
    %s177 = scalar_select %p174, %s175, %s176
    %p180 = pneg %p174
    %p181 = scmp.eq.s32.totalorder %s13, 1
    %p182 = por %p180, %p181
    %p183 = scmp.ne.s32.totalorder %s175, %s178
    %p184 = scmp.eq.s32.totalorder %s13, 0
    %p185 = por %p183, %p184
    %p186 = scmp.ne.s32.totalorder %s175, %s178
    %p187 = scmp.eq.s32.totalorder %s18, 1
    %p188 = por %p186, %p187
    %p189 = scmp.ne.s32.totalorder %s178, %s179
    %p190 = scmp.eq.s32.totalorder %s18, 0
    %p191 = por %p189, %p190
    %p192 = scmp.ne.s32.totalorder %s178, %s179
    %p193 = scmp.eq.s32.totalorder %s19, 1
    %p194 = por %p192, %p193
    %p196 = scmp.ne.s32.totalorder %s179, %s195
    %p197 = scmp.eq.s32.totalorder %s19, 0
    %p198 = por %p196, %p197
    %p199 = scmp.le.s32.totalorder 1, %s13
    %p200 = scmp.lt.s32.totalorder %s13, 3
    %p201 = pnand %p199, %p200
    %p202 = pneg %p201
    // Predicated region
    $region9: #{tpu_custom_call.1} parent=5 // pred_check
      _
    $region10: #{tpu_custom_call.1} parent=5 // pred_check_branch
      %204 = sbr.rel (%p201) target = $region12
    $region11: #{tpu_custom_call.1} parent=5 // pred_region
      %s205 = ssub.s32 %s13, 1
      // Predicated region
      $region13: #{tpu_custom_call.1} parent=11 // pred_check
        %p206 = pneg %p60
      $region14: #{tpu_custom_call.1} parent=11 // pred_check_branch
        %208 = sbr.rel (%p206) target = $region16
      $region15: #{tpu_custom_call.1} parent=11 // pred_region
        _
      $region16: #{tpu_custom_call.1} parent=11 // pred_fallthru
        _
      // Predicated region
      $region17: #{tpu_custom_call.1} parent=11 // pred_check
        %p209 = pneg %p81
      $region18: #{tpu_custom_call.1} parent=11 // pred_check_branch
        %211 = sbr.rel (%p209) target = $region20
      $region19: #{tpu_custom_call.1} parent=11 // pred_region
        _
      $region20: #{tpu_custom_call.1} parent=11 // pred_fallthru
        _
      // Predicated region
      $region21: #{tpu_custom_call.1} parent=11 // pred_check
        %p212 = pneg %p102
      $region22: #{tpu_custom_call.1} parent=11 // pred_check_branch
        %214 = sbr.rel (%p212) target = $region24
      $region23: #{tpu_custom_call.1} parent=11 // pred_region
        _
      $region24: #{tpu_custom_call.1} parent=11 // pred_fallthru
        _
      // Predicated region
      $region25: #{tpu_custom_call.1} parent=11 // pred_check
        %p215 = pneg %p123
      $region26: #{tpu_custom_call.1} parent=11 // pred_check_branch
        %217 = sbr.rel (%p215) target = $region28
      $region27: #{tpu_custom_call.1} parent=11 // pred_region
        _
      $region28: #{tpu_custom_call.1} parent=11 // pred_fallthru
        _
      // Predicated region
      $region29: #{tpu_custom_call.1} parent=11 // pred_check
        %p218 = pneg %p144
      $region30: #{tpu_custom_call.1} parent=11 // pred_check_branch
        %220 = sbr.rel (%p218) target = $region32
      $region31: #{tpu_custom_call.1} parent=11 // pred_region
        _
      $region32: #{tpu_custom_call.1} parent=11 // pred_fallthru
        _
      // Predicated region
      $region33: #{tpu_custom_call.1} parent=11 // pred_check
        %p221 = pneg %p165
      $region34: #{tpu_custom_call.1} parent=11 // pred_check_branch
        %223 = sbr.rel (%p221) target = $region36
      $region35: #{tpu_custom_call.1} parent=11 // pred_region
        _
      $region36: #{tpu_custom_call.1} parent=11 // pred_fallthru
        _
    $region12: #{tpu_custom_call.1} parent=5 // pred_fallthru
      _
    %p224 = scmp.lt.s32.totalorder %s13, 2
    // Predicated region
    $region37: #{tpu_custom_call.1} parent=5 // pred_check
      %p225 = pneg %p224
    $region38: #{tpu_custom_call.1} parent=5 // pred_check_branch
      %227 = sbr.rel (%p225) target = $region40
    $region39: #{tpu_custom_call.1} parent=5 // pred_region
      // Predicated region
      $region41: #{tpu_custom_call.1} parent=39 // pred_check
        %p228 = pneg %p33
      $region42: #{tpu_custom_call.1} parent=39 // pred_check_branch
        %230 = sbr.rel (%p228) target = $region44
      $region43: #{tpu_custom_call.1} parent=39 // pred_region
        %s231 = smul.u32 16, %s13
        %p232 = scmp.lt.s32.totalorder %s231, 31
        %s233 = scalar_select %p232, %s231, 31
        %s234 = smul.addr %s233, 8
        %s235 = scalar_lea.vmem %s0, %s234
        %s236 = smul.u32 16, %s13
      $region44: #{tpu_custom_call.1} parent=39 // pred_fallthru
        _
    $region40: #{tpu_custom_call.1} parent=5 // pred_fallthru
      _
    %p237 = scmp.le.s32.totalorder 1, %s13
    %p238 = scmp.lt.s32.totalorder %s13, 3
    %p239 = pnand %p237, %p238
    %p240 = pneg %p239
    // Predicated region
    $region45: #{tpu_custom_call.1} parent=5 // pred_check
      _
    $region46: #{tpu_custom_call.1} parent=5 // pred_check_branch
      %242 = sbr.rel (%p239) target = $region48
    $region47: #{tpu_custom_call.1} parent=5 // pred_region
      %s243 = ssub.s32 %s13, 1
      %s244 = smul.u32 16, %s18
      %p245 = scmp.lt.s32.totalorder %s244, 31
      %s246 = scalar_select %p245, %s244, 31
      %s247 = smul.addr %s246, 8
      %s248 = scalar_lea.vmem %s0, %s247
      %p249 = pneg %p39
      %p250 = pneg %p36
      %p251 = pneg %p60
      %p252 = pneg %p57
      %p253 = pneg %p81
      %p254 = pneg %p78
      %p255 = pneg %p102
      %p256 = pneg %p99
      %p257 = pneg %p123
      %p258 = pneg %p120
      %p259 = pneg %p144
      %p260 = pneg %p141
      %p261 = pneg %p165
      %p262 = pneg %p162
      %p263 = pneg %p191
      %p264 = pneg %p188
      %s265 = smul.u32 16, %s18
      %p266 = scmp.lt.s32.totalorder %s265, 31
      %s267 = scalar_select %p266, %s265, 31
      %s268 = smul.addr %s267, 8
      %s269 = scalar_lea.vmem %s7, %s268
      %s270 = smul.u32 16, %s18
      %p271 = scmp.lt.s32.totalorder %s270, 31
      %s272 = scalar_select %p271, %s270, 31
      %s273 = smul.addr %s272, 8
      %s274 = scalar_lea.vmem %s0, %s273
      %s275 = smul.u32 16, %s18
      %s276 = smul.u32 16, %s18
      %p277 = scmp.lt.s32.totalorder %s276, 31
      %s278 = scalar_select %p277, %s276, 31
      %s279 = smul.addr %s278, 8
      %s280 = scalar_lea.vmem %s7, %s279
      %s281 = smul.u32 16, %s18
      %v282 = vld [vmem:[%s274] sm:$0xff]
      %v283 = vld [vmem:[%s274 + $0x8] sm:$0xff]
      %v284 = vld [vmem:[%s274 + $0x10] sm:$0xff]
      %v285 = vld [vmem:[%s274 + $0x18] sm:$0xff]
      %v286 = vld [vmem:[%s274 + $0x20] sm:$0xff]
      %v287 = vld [vmem:[%s274 + $0x28] sm:$0xff]
      %v288 = vld [vmem:[%s274 + $0x30] sm:$0xff]
      %v289 = vld [vmem:[%s274 + $0x38] sm:$0xff]
      %v290 = vld [vmem:[%s274 + $0x40] sm:$0xff]
      %v291 = vld [vmem:[%s274 + $0x48] sm:$0xff]
      %v292 = vld [vmem:[%s274 + $0x50] sm:$0xff]
      %v293 = vld [vmem:[%s274 + $0x58] sm:$0xff]
      %v294 = vld [vmem:[%s274 + $0x60] sm:$0xff]
      %v295 = vld [vmem:[%s274 + $0x68] sm:$0xff]
      %v296 = vld [vmem:[%s274 + $0x70] sm:$0xff]
      %v297 = vld [vmem:[%s274 + $0x78] sm:$0xff]
      %v298 = vld [vmem:[%s1] sm:$0xff]
      %v299 = vld [vmem:[%s1 + $0x8] sm:$0xff]
      %v300 = vld [vmem:[%s1 + $0x10] sm:$0xff]
      %v301 = vld [vmem:[%s1 + $0x18] sm:$0xff]
      %v302 = vld [vmem:[%s1 + $0x20] sm:$0xff]
      %v303 = vld [vmem:[%s1 + $0x28] sm:$0xff]
      %v304 = vld [vmem:[%s1 + $0x30] sm:$0xff]
      %v305 = vld [vmem:[%s1 + $0x38] sm:$0xff]
      %v306 = vld [vmem:[%s2] sm:$0xff]
      %v307 = vld [vmem:[%s2 + $0x8] sm:$0xff]
      %v308 = vld [vmem:[%s2 + $0x10] sm:$0xff]
      %v309 = vld [vmem:[%s2 + $0x18] sm:$0xff]
      %v310 = vld [vmem:[%s2 + $0x20] sm:$0xff]
      %v311 = vld [vmem:[%s2 + $0x28] sm:$0xff]
      %v312 = vld [vmem:[%s2 + $0x30] sm:$0xff]
      %v313 = vld [vmem:[%s2 + $0x38] sm:$0xff]
      %315 = vset.pattern.permute.xlu0 0
      %316 = vperm.xlu0 %315, %v306
      %v317 = vpop.permute.xlu0 %316
      %320 = vset.pattern.permute.xlu0 0
      %321 = vperm.xlu0 %320, %v307
      %v322 = vpop.permute.xlu0 %321
      %325 = vset.pattern.permute.xlu0 0
      %326 = vperm.xlu0 %325, %v308
      %v327 = vpop.permute.xlu0 %326
      %330 = vset.pattern.permute.xlu0 0
      %331 = vperm.xlu0 %330, %v309
      %v332 = vpop.permute.xlu0 %331
      %335 = vset.pattern.permute.xlu0 0
      %336 = vperm.xlu0 %335, %v310
      %v337 = vpop.permute.xlu0 %336
      %340 = vset.pattern.permute.xlu0 0
      %341 = vperm.xlu0 %340, %v311
      %v342 = vpop.permute.xlu0 %341
      %345 = vset.pattern.permute.xlu0 0
      %346 = vperm.xlu0 %345, %v312
      %v347 = vpop.permute.xlu0 %346
      %350 = vset.pattern.permute.xlu0 0
      %351 = vperm.xlu0 %350, %v313
      %v352 = vpop.permute.xlu0 %351
      %vm354 = vcmask 261120
      %v356 = vsel %vm354, %v298, 0
      %v359 = vsel %vm354, %v299, 0
      %v362 = vsel %vm354, %v300, 0
      %v365 = vsel %vm354, %v301, 0
      %v368 = vsel %vm354, %v302, 0
      %v371 = vsel %vm354, %v303, 0
      %v374 = vsel %vm354, %v304, 0
      %v377 = vsel %vm354, %v305, 0
      %v380 = vsel %vm354, %v282, 0
      %v383 = vsel %vm354, %v283, 0
      %v386 = vsel %vm354, %v284, 0
      %v389 = vsel %vm354, %v285, 0
      %v392 = vsel %vm354, %v286, 0
      %v395 = vsel %vm354, %v287, 0
      %v398 = vsel %vm354, %v288, 0
      %v401 = vsel %vm354, %v289, 0
      %v404 = vsel %vm354, %v290, 0
      %v407 = vsel %vm354, %v291, 0
      %v410 = vsel %vm354, %v292, 0
      %v413 = vsel %vm354, %v293, 0
      %v416 = vsel %vm354, %v294, 0
      %v419 = vsel %vm354, %v295, 0
      %v422 = vsel %vm354, %v296, 0
      %v425 = vsel %vm354, %v297, 0
      %427 = vmatprep.subr.mxu0 0.0
      %428 = vmatpush1.xpose.msra.mxu0 %v425
      %429 = vmatprep.subr.mxu0 0.0
      %430 = vmatpush1.xpose.msra.mxu0 %v422
      %431 = vmatprep.subr.mxu0 0.0
      %432 = vmatpush1.xpose.msra.mxu0 %v419
      %433 = vmatprep.subr.mxu0 0.0
      %434 = vmatpush1.xpose.msra.mxu0 %v416
      %435 = vmatprep.subr.mxu0 0.0
      %436 = vmatpush1.xpose.msra.mxu0 %v413
      %437 = vmatprep.subr.mxu0 0.0
      %438 = vmatpush1.xpose.msra.mxu0 %v410
      %439 = vmatprep.subr.mxu0 0.0
      %440 = vmatpush1.xpose.msra.mxu0 %v407
      %441 = vmatprep.subr.mxu0 0.0
      %442 = vmatpush1.xpose.msra.mxu0 %v404
      %443 = vmatprep.subr.mxu0 0.0
      %444 = vmatpush1.xpose.msra.mxu0 %v401
      %445 = vmatprep.subr.mxu0 0.0
      %446 = vmatpush1.xpose.msra.mxu0 %v398
      %447 = vmatprep.subr.mxu0 0.0
      %448 = vmatpush1.xpose.msra.mxu0 %v395
      %449 = vmatprep.subr.mxu0 0.0
      %450 = vmatpush1.xpose.msra.mxu0 %v392
      %451 = vmatprep.subr.mxu0 0.0
      %452 = vmatpush1.xpose.msra.mxu0 %v389
      %453 = vmatprep.subr.mxu0 0.0
      %454 = vmatpush1.xpose.msra.mxu0 %v386
      %455 = vmatprep.subr.mxu0 0.0
      %456 = vmatpush1.xpose.msra.mxu0 %v383
      %457 = vmatprep.subr.mxu0 0.0
      %458 = vmatpush1.xpose.msra.mxu0 %v380
      %459 = vmatprep.subr.mxu0 0.0
      %460 = vmatpush2.xpose.msra.mxu0 0.0
      %461 = vmatprep.subr.mxu0 0.0
      %462 = vmatpush2.xpose.msra.mxu0 0.0
      %463 = vmatprep.subr.mxu0 0.0
      %464 = vmatpush2.xpose.msra.mxu0 0.0
      %465 = vmatprep.subr.mxu0 0.0
      %466 = vmatpush2.xpose.msra.mxu0 0.0
      %467 = vmatprep.subr.mxu0 0.0
      %468 = vmatpush2.xpose.msra.mxu0 0.0
      %469 = vmatprep.subr.mxu0 0.0
      %470 = vmatpush2.xpose.msra.mxu0 0.0
      %471 = vmatprep.subr.mxu0 0.0
      %472 = vmatpush2.xpose.msra.mxu0 0.0
      %473 = vmatprep.subr.mxu0 0.0
      %474 = vmatpush2.xpose.msra.mxu0 0.0
      %475 = vmatprep.subr.mxu0 0.0
      %476 = vmatpush2.xpose.msra.mxu0 0.0
      %477 = vmatprep.subr.mxu0 0.0
      %478 = vmatpush2.xpose.msra.mxu0 0.0
      %479 = vmatprep.subr.mxu0 0.0
      %480 = vmatpush2.xpose.msra.mxu0 0.0
      %481 = vmatprep.subr.mxu0 0.0
      %482 = vmatpush2.xpose.msra.mxu0 0.0
      %483 = vmatprep.subr.mxu0 0.0
      %484 = vmatpush2.xpose.msra.mxu0 0.0
      %485 = vmatprep.subr.mxu0 0.0
      %486 = vmatpush2.xpose.msra.mxu0 0.0
      %487 = vmatprep.subr.mxu0 0.0
      %488 = vmatpush2.xpose.msra.mxu0 0.0
      %489 = vmatprep.subr.mxu0 0.0
      %490 = vmatpush2.xpose.msra.mxu0 0.0
      %491 = vmatprep.mubr.f32.mxu0 0.0
      %492 = vmatmul.mubr.f32.gmra.mxu0 %v356
      %v493 = vpop.f32.mrf.mxu0
      %v494 = vadd.f32 %v317, %v493
      %v495 = vpop.f32.mrf.mxu0
      %496 = vmatprep.mubr.f32.mxu0 0.0
      %497 = vmatmul.mubr.f32.gmra.mxu0 %v359
      %v498 = vpop.f32.mrf.mxu0
      %v499 = vadd.f32 %v322, %v498
      %v500 = vpop.f32.mrf.mxu0
      %501 = vmatprep.mubr.f32.mxu0 0.0
      %502 = vmatmul.mubr.f32.gmra.mxu0 %v362
      %v503 = vpop.f32.mrf.mxu0
      %v504 = vadd.f32 %v327, %v503
      %v505 = vpop.f32.mrf.mxu0
      %506 = vmatprep.mubr.f32.mxu0 0.0
      %507 = vmatmul.mubr.f32.gmra.mxu0 %v365
      %v508 = vpop.f32.mrf.mxu0
      %v509 = vadd.f32 %v332, %v508
      %v510 = vpop.f32.mrf.mxu0
      %511 = vmatprep.mubr.f32.mxu0 0.0
      %512 = vmatmul.mubr.f32.gmra.mxu0 %v368
      %v513 = vpop.f32.mrf.mxu0
      %v514 = vadd.f32 %v337, %v513
      %v515 = vpop.f32.mrf.mxu0
      %516 = vmatprep.mubr.f32.mxu0 0.0
      %517 = vmatmul.mubr.f32.gmra.mxu0 %v371
      %v518 = vpop.f32.mrf.mxu0
      %v519 = vadd.f32 %v342, %v518
      %v520 = vpop.f32.mrf.mxu0
      %521 = vmatprep.mubr.f32.mxu0 0.0
      %522 = vmatmul.mubr.f32.gmra.mxu0 %v374
      %v523 = vpop.f32.mrf.mxu0
      %v524 = vadd.f32 %v347, %v523
      %v525 = vpop.f32.mrf.mxu0
      %526 = vmatprep.mubr.f32.mxu0 0.0
      %527 = vmatmul.mubr.f32.gmra.mxu0 %v377
      %v528 = vpop.f32.mrf.mxu0
      %v529 = vadd.f32 %v352, %v528
      %v530 = vpop.f32.mrf.mxu0
      %531 = vdwg.mxu0
      %v532 = vtanh.pop %v494
      %v533 = vtanh.pop %v499
      %v534 = vtanh.pop %v504
      %v535 = vtanh.pop %v509
      %v536 = vtanh.pop %v514
      %v537 = vtanh.pop %v519
      %v538 = vtanh.pop %v524
      %v539 = vtanh.pop %v529
      %v540 = vld [vmem:[%s3] sm:$0xff]
      %v541 = vld [vmem:[%s3 + $0x8] sm:$0xff]
      %v542 = vld [vmem:[%s3 + $0x10] sm:$0xff]
      %v543 = vld [vmem:[%s3 + $0x18] sm:$0xff]
      %v544 = vld [vmem:[%s3 + $0x20] sm:$0xff]
      %v545 = vld [vmem:[%s3 + $0x28] sm:$0xff]
      %v546 = vld [vmem:[%s3 + $0x30] sm:$0xff]
      %v547 = vld [vmem:[%s3 + $0x38] sm:$0xff]
      %v548 = vld [vmem:[%s4] sm:$0xff]
      %v549 = vld [vmem:[%s4 + $0x8] sm:$0xff]
      %v550 = vld [vmem:[%s4 + $0x10] sm:$0xff]
      %v551 = vld [vmem:[%s4 + $0x18] sm:$0xff]
      %v552 = vld [vmem:[%s4 + $0x20] sm:$0xff]
      %v553 = vld [vmem:[%s4 + $0x28] sm:$0xff]
      %v554 = vld [vmem:[%s4 + $0x30] sm:$0xff]
      %v555 = vld [vmem:[%s4 + $0x38] sm:$0xff]
      %557 = vset.pattern.permute.xlu0 0
      %558 = vperm.xlu0 %557, %v548
      %v559 = vpop.permute.xlu0 %558
      %562 = vset.pattern.permute.xlu0 0
      %563 = vperm.xlu0 %562, %v549
      %v564 = vpop.permute.xlu0 %563
      %567 = vset.pattern.permute.xlu0 0
      %568 = vperm.xlu0 %567, %v550
      %v569 = vpop.permute.xlu0 %568
      %572 = vset.pattern.permute.xlu0 0
      %573 = vperm.xlu0 %572, %v551
      %v574 = vpop.permute.xlu0 %573
      %577 = vset.pattern.permute.xlu0 0
      %578 = vperm.xlu0 %577, %v552
      %v579 = vpop.permute.xlu0 %578
      %582 = vset.pattern.permute.xlu0 0
      %583 = vperm.xlu0 %582, %v553
      %v584 = vpop.permute.xlu0 %583
      %587 = vset.pattern.permute.xlu0 0
      %588 = vperm.xlu0 %587, %v554
      %v589 = vpop.permute.xlu0 %588
      %592 = vset.pattern.permute.xlu0 0
      %593 = vperm.xlu0 %592, %v555
      %v594 = vpop.permute.xlu0 %593
      %vm596 = vcmask 523264
      %v598 = vsel %vm596, %v540, 0
      %v601 = vsel %vm596, %v541, 0
      %v604 = vsel %vm596, %v542, 0
      %v607 = vsel %vm596, %v543, 0
      %v610 = vsel %vm596, %v544, 0
      %v613 = vsel %vm596, %v545, 0
      %v616 = vsel %vm596, %v546, 0
      %v619 = vsel %vm596, %v547, 0
      %621 = vmatprep.subr.mxu0 0.0
      %622 = vmatpush1.msra.mxu0 0.0
      %623 = vmatprep.subr.mxu0 0.0
      %624 = vmatpush1.msra.mxu0 0.0
      %625 = vmatprep.subr.mxu0 0.0
      %626 = vmatpush1.msra.mxu0 0.0
      %627 = vmatprep.subr.mxu0 0.0
      %628 = vmatpush1.msra.mxu0 0.0
      %629 = vmatprep.subr.mxu0 0.0
      %630 = vmatpush1.msra.mxu0 0.0
      %631 = vmatprep.subr.mxu0 0.0
      %632 = vmatpush1.msra.mxu0 0.0
      %633 = vmatprep.subr.mxu0 0.0
      %634 = vmatpush1.msra.mxu0 0.0
      %635 = vmatprep.subr.mxu0 0.0
      %636 = vmatpush1.msra.mxu0 0.0
      %637 = vmatprep.subr.mxu0 0.0
      %638 = vmatpush1.msra.mxu0 %v539
      %639 = vmatprep.subr.mxu0 0.0
      %640 = vmatpush1.msra.mxu0 %v538
      %641 = vmatprep.subr.mxu0 0.0
      %642 = vmatpush1.msra.mxu0 %v537
      %643 = vmatprep.subr.mxu0 0.0
      %644 = vmatpush1.msra.mxu0 %v536
      %645 = vmatprep.subr.mxu0 0.0
      %646 = vmatpush1.msra.mxu0 %v535
      %647 = vmatprep.subr.mxu0 0.0
      %648 = vmatpush1.msra.mxu0 %v534
      %649 = vmatprep.subr.mxu0 0.0
      %650 = vmatpush1.msra.mxu0 %v533
      %651 = vmatprep.subr.mxu0 0.0
      %652 = vmatpush1.msra.mxu0 %v532
      %653 = vmatprep.subr.mxu0 0.0
      %654 = vmatpush2.msra.mxu0 0.0
      %655 = vmatprep.subr.mxu0 0.0
      %656 = vmatpush2.msra.mxu0 0.0
      %657 = vmatprep.subr.mxu0 0.0
      %658 = vmatpush2.msra.mxu0 0.0
      %659 = vmatprep.subr.mxu0 0.0
      %660 = vmatpush2.msra.mxu0 0.0
      %661 = vmatprep.subr.mxu0 0.0
      %662 = vmatpush2.msra.mxu0 0.0
      %663 = vmatprep.subr.mxu0 0.0
      %664 = vmatpush2.msra.mxu0 0.0
      %665 = vmatprep.subr.mxu0 0.0
      %666 = vmatpush2.msra.mxu0 0.0
      %667 = vmatprep.subr.mxu0 0.0
      %668 = vmatpush2.msra.mxu0 0.0
      %669 = vmatprep.subr.mxu0 0.0
      %670 = vmatpush2.msra.mxu0 0.0
      %671 = vmatprep.subr.mxu0 0.0
      %672 = vmatpush2.msra.mxu0 0.0
      %673 = vmatprep.subr.mxu0 0.0
      %674 = vmatpush2.msra.mxu0 0.0
      %675 = vmatprep.subr.mxu0 0.0
      %676 = vmatpush2.msra.mxu0 0.0
      %677 = vmatprep.subr.mxu0 0.0
      %678 = vmatpush2.msra.mxu0 0.0
      %679 = vmatprep.subr.mxu0 0.0
      %680 = vmatpush2.msra.mxu0 0.0
      %681 = vmatprep.subr.mxu0 0.0
      %682 = vmatpush2.msra.mxu0 0.0
      %683 = vmatprep.subr.mxu0 0.0
      %684 = vmatpush2.msra.mxu0 0.0
      %685 = vmatprep.mubr.f32.mxu0 0.0
      %686 = vmatmul.mubr.f32.gmra.mxu0 %v598
      %v687 = vpop.f32.mrf.mxu0
      %v688 = vadd.f32 %v559, %v687
      %v689 = vpop.f32.mrf.mxu0
      %690 = vmatprep.mubr.f32.mxu0 0.0
      %691 = vmatmul.mubr.f32.gmra.mxu0 %v601
      %v692 = vpop.f32.mrf.mxu0
      %v693 = vadd.f32 %v564, %v692
      %v694 = vpop.f32.mrf.mxu0
      %695 = vmatprep.mubr.f32.mxu0 0.0
      %696 = vmatmul.mubr.f32.gmra.mxu0 %v604
      %v697 = vpop.f32.mrf.mxu0
      %v698 = vadd.f32 %v569, %v697
      %v699 = vpop.f32.mrf.mxu0
      %700 = vmatprep.mubr.f32.mxu0 0.0
      %701 = vmatmul.mubr.f32.gmra.mxu0 %v607
      %v702 = vpop.f32.mrf.mxu0
      %v703 = vadd.f32 %v574, %v702
      %v704 = vpop.f32.mrf.mxu0
      %705 = vmatprep.mubr.f32.mxu0 0.0
      %706 = vmatmul.mubr.f32.gmra.mxu0 %v610
      %v707 = vpop.f32.mrf.mxu0
      %v708 = vadd.f32 %v579, %v707
      %v709 = vpop.f32.mrf.mxu0
      %710 = vmatprep.mubr.f32.mxu0 0.0
      %711 = vmatmul.mubr.f32.gmra.mxu0 %v613
      %v712 = vpop.f32.mrf.mxu0
      %v713 = vadd.f32 %v584, %v712
      %v714 = vpop.f32.mrf.mxu0
      %715 = vmatprep.mubr.f32.mxu0 0.0
      %716 = vmatmul.mubr.f32.gmra.mxu0 %v616
      %v717 = vpop.f32.mrf.mxu0
      %v718 = vadd.f32 %v589, %v717
      %v719 = vpop.f32.mrf.mxu0
      %720 = vmatprep.mubr.f32.mxu0 0.0
      %721 = vmatmul.mubr.f32.gmra.mxu0 %v619
      %v722 = vpop.f32.mrf.mxu0
      %v723 = vadd.f32 %v594, %v722
      %v724 = vpop.f32.mrf.mxu0
      %725 = vdwg.mxu0
      %v726 = vtanh.pop %v688
      %v727 = vtanh.pop %v693
      %v728 = vtanh.pop %v698
      %v729 = vtanh.pop %v703
      %v730 = vtanh.pop %v708
      %v731 = vtanh.pop %v713
      %v732 = vtanh.pop %v718
      %v733 = vtanh.pop %v723
      %v734 = vld [vmem:[%s5] sm:$0xff]
      %v735 = vld [vmem:[%s6] sm:$0xff]
      %737 = vset.pattern.permute.xlu0 0
      %738 = vperm.xlu0 %737, %v735
      %v739 = vpop.permute.xlu0 %738
      %v742 = vsel %vm596, %v734, 0
      %744 = vmatprep.subr.mxu0 0.0
      %745 = vmatpush1.msra.mxu0 0.0
      %746 = vmatprep.subr.mxu0 0.0
      %747 = vmatpush1.msra.mxu0 0.0
      %748 = vmatprep.subr.mxu0 0.0
      %749 = vmatpush1.msra.mxu0 0.0
      %750 = vmatprep.subr.mxu0 0.0
      %751 = vmatpush1.msra.mxu0 0.0
      %752 = vmatprep.subr.mxu0 0.0
      %753 = vmatpush1.msra.mxu0 0.0
      %754 = vmatprep.subr.mxu0 0.0
      %755 = vmatpush1.msra.mxu0 0.0
      %756 = vmatprep.subr.mxu0 0.0
      %757 = vmatpush1.msra.mxu0 0.0
      %758 = vmatprep.subr.mxu0 0.0
      %759 = vmatpush1.msra.mxu0 0.0
      %760 = vmatprep.subr.mxu0 0.0
      %761 = vmatpush1.msra.mxu0 %v733
      %762 = vmatprep.subr.mxu0 0.0
      %763 = vmatpush1.msra.mxu0 %v732
      %764 = vmatprep.subr.mxu0 0.0
      %765 = vmatpush1.msra.mxu0 %v731
      %766 = vmatprep.subr.mxu0 0.0
      %767 = vmatpush1.msra.mxu0 %v730
      %768 = vmatprep.subr.mxu0 0.0
      %769 = vmatpush1.msra.mxu0 %v729
      %770 = vmatprep.subr.mxu0 0.0
      %771 = vmatpush1.msra.mxu0 %v728
      %772 = vmatprep.subr.mxu0 0.0
      %773 = vmatpush1.msra.mxu0 %v727
      %774 = vmatprep.subr.mxu0 0.0
      %775 = vmatpush1.msra.mxu0 %v726
      %776 = vmatprep.subr.mxu0 0.0
      %777 = vmatpush2.msra.mxu0 0.0
      %778 = vmatprep.subr.mxu0 0.0
      %779 = vmatpush2.msra.mxu0 0.0
      %780 = vmatprep.subr.mxu0 0.0
      %781 = vmatpush2.msra.mxu0 0.0
      %782 = vmatprep.subr.mxu0 0.0
      %783 = vmatpush2.msra.mxu0 0.0
      %784 = vmatprep.subr.mxu0 0.0
      %785 = vmatpush2.msra.mxu0 0.0
      %786 = vmatprep.subr.mxu0 0.0
      %787 = vmatpush2.msra.mxu0 0.0
      %788 = vmatprep.subr.mxu0 0.0
      %789 = vmatpush2.msra.mxu0 0.0
      %790 = vmatprep.subr.mxu0 0.0
      %791 = vmatpush2.msra.mxu0 0.0
      %792 = vmatprep.subr.mxu0 0.0
      %793 = vmatpush2.msra.mxu0 0.0
      %794 = vmatprep.subr.mxu0 0.0
      %795 = vmatpush2.msra.mxu0 0.0
      %796 = vmatprep.subr.mxu0 0.0
      %797 = vmatpush2.msra.mxu0 0.0
      %798 = vmatprep.subr.mxu0 0.0
      %799 = vmatpush2.msra.mxu0 0.0
      %800 = vmatprep.subr.mxu0 0.0
      %801 = vmatpush2.msra.mxu0 0.0
      %802 = vmatprep.subr.mxu0 0.0
      %803 = vmatpush2.msra.mxu0 0.0
      %804 = vmatprep.subr.mxu0 0.0
      %805 = vmatpush2.msra.mxu0 0.0
      %806 = vmatprep.subr.mxu0 0.0
      %807 = vmatpush2.msra.mxu0 0.0
      %808 = vmatprep.mubr.f32.mxu0 0.0
      %809 = vmatmul.mubr.f32.gmra.mxu0 %v742
      %v810 = vpop.f32.mrf.mxu0
      %v811 = vadd.f32 %v739, %v810
      %v812 = vpop.f32.mrf.mxu0
      %813 = vdwg.mxu0
      %814 = vxpose.xlu0.b32.start [1/16] %v811, 128
      %815 = vxpose.xlu0.b32.cont [2/16] 0.0, 128
      %816 = vxpose.xlu0.b32.cont [3/16] 0.0, 128
      %817 = vxpose.xlu0.b32.cont [4/16] 0.0, 128
      %818 = vxpose.xlu0.b32.cont [5/16] 0.0, 128
      %819 = vxpose.xlu0.b32.cont [6/16] 0.0, 128
      %820 = vxpose.xlu0.b32.cont [7/16] 0.0, 128
      %821 = vxpose.xlu0.b32.cont [8/16] 0.0, 128
      %822 = vxpose.xlu0.b32.cont [9/16] 0.0, 128
      %823 = vxpose.xlu0.b32.cont [10/16] 0.0, 128
      %824 = vxpose.xlu0.b32.cont [11/16] 0.0, 128
      %825 = vxpose.xlu0.b32.cont [12/16] 0.0, 128
      %826 = vxpose.xlu0.b32.cont [13/16] 0.0, 128
      %827 = vxpose.xlu0.b32.cont [14/16] 0.0, 128
      %828 = vxpose.xlu0.b32.cont [15/16] 0.0, 128
      %829 = vxpose.xlu0.b32.end [16/16] 0.0, 128
      %v830 = vpop.trf.xlu0
      %v831 = vpop.trf.xlu0
      %v832 = vpop.trf.xlu0
      %v833 = vpop.trf.xlu0
      %v834 = vpop.trf.xlu0
      %v835 = vpop.trf.xlu0
      %v836 = vpop.trf.xlu0
      %v837 = vpop.trf.xlu0
      %v838 = vpop.trf.xlu0
      %v839 = vpop.trf.xlu0
      %v840 = vpop.trf.xlu0
      %v841 = vpop.trf.xlu0
      %v842 = vpop.trf.xlu0
      %v843 = vpop.trf.xlu0
      %v844 = vpop.trf.xlu0
      %v845 = vpop.trf.xlu0
      %vm846 = vcmask 31744
      %847 = vst.msk [vmem:[%s280] sm:$0xff] %vm846, %v830
      %848 = vst.msk [vmem:[%s280 + $0x8] sm:$0xff] %vm846, %v831
      %849 = vst.msk [vmem:[%s280 + $0x10] sm:$0xff] %vm846, %v832
      %850 = vst.msk [vmem:[%s280 + $0x18] sm:$0xff] %vm846, %v833
      %851 = vst.msk [vmem:[%s280 + $0x20] sm:$0xff] %vm846, %v834
      %852 = vst.msk [vmem:[%s280 + $0x28] sm:$0xff] %vm846, %v835
      %853 = vst.msk [vmem:[%s280 + $0x30] sm:$0xff] %vm846, %v836
      %854 = vst.msk [vmem:[%s280 + $0x38] sm:$0xff] %vm846, %v837
      %855 = vst.msk [vmem:[%s280 + $0x40] sm:$0xff] %vm846, %v838
      %856 = vst.msk [vmem:[%s280 + $0x48] sm:$0xff] %vm846, %v839
      %857 = vst.msk [vmem:[%s280 + $0x50] sm:$0xff] %vm846, %v840
      %858 = vst.msk [vmem:[%s280 + $0x58] sm:$0xff] %vm846, %v841
      %859 = vst.msk [vmem:[%s280 + $0x60] sm:$0xff] %vm846, %v842
      %860 = vst.msk [vmem:[%s280 + $0x68] sm:$0xff] %vm846, %v843
      %861 = vst.msk [vmem:[%s280 + $0x70] sm:$0xff] %vm846, %v844
      %862 = vst.msk [vmem:[%s280 + $0x78] sm:$0xff] %vm846, %v845
      %s863 = smul.u32 16, %s18
      %p864 = scmp.lt.s32.totalorder %s863, 31
      %s865 = scalar_select %p864, %s863, 31
      %s866 = smul.addr %s865, 8
      %s867 = scalar_lea.vmem %s7, %s866
      // Predicated region
      $region49: #{tpu_custom_call.1} parent=47 // pred_check
        %p868 = pneg %p188
      $region50: #{tpu_custom_call.1} parent=47 // pred_check_branch
        %870 = sbr.rel (%p868) target = $region52
      $region51: #{tpu_custom_call.1} parent=47 // pred_region
        %s871 = smul.u32 16, %s18
      $region52: #{tpu_custom_call.1} parent=47 // pred_fallthru
        _
    $region48: #{tpu_custom_call.1} parent=5 // pred_fallthru
      _
    %p872 = scmp.le.s32.totalorder 2, %s13
    // Predicated region
    $region53: #{tpu_custom_call.1} parent=5 // pred_check
      %p873 = pneg %p872
    $region54: #{tpu_custom_call.1} parent=5 // pred_check_branch
      %875 = sbr.rel (%p873) target = $region56
    $region55: #{tpu_custom_call.1} parent=5 // pred_region
      %s876 = ssub.s32 %s13, 2
      // Predicated region
      $region57: #{tpu_custom_call.1} parent=55 // pred_check
        %p877 = pneg %p194
      $region58: #{tpu_custom_call.1} parent=55 // pred_check_branch
        %879 = sbr.rel (%p877) target = $region60
      $region59: #{tpu_custom_call.1} parent=55 // pred_region
        %s880 = smul.u32 16, %s19
        %p881 = scmp.lt.s32.totalorder %s880, 31
        %s882 = scalar_select %p881, %s880, 31
        %s883 = smul.addr %s882, 8
        %s884 = scalar_lea.vmem %s7, %s883
      $region60: #{tpu_custom_call.1} parent=55 // pred_fallthru
        _
    $region56: #{tpu_custom_call.1} parent=5 // pred_fallthru
      _
  $region6: #{tpu_custom_call.1} parent=0 // loop_footer
    %s17 = sadd.s32 1, %s13
  $region7: #{tpu_custom_call.1} parent=0 // loop_footer_branch
    %12 = sbr.rel target = $region3
  $region8: #{tpu_custom_call.1} parent=0 // loop_exit
    _

// kernel: tpu_custom_call.1
$region0: #{tpu_custom_call.1}
  #allocation0 [shape = 'u32[]', space=smem, size = 0x4, offset = 0x4, fixed_abs, tag = 'smem constant byte address 0x4 - core index']
  #allocation1 [shape = 'u32[144,128]{1,0:T(1,128)}', space=vmem, size = 0x12000, scoped, tag = 'internal scratch']
  %s0 = inlined_call_operand.vmem [shape: f32[256,32], index: 0, kind: input, shape index: {}]
  %s1 = inlined_call_operand.vmem [shape: f32[64,32], index: 1, kind: input, shape index: {}]
  %s2 = inlined_call_operand.vmem [shape: f32[64,1], index: 2, kind: input, shape index: {}]
  %s3 = inlined_call_operand.vmem [shape: f32[64,64], index: 3, kind: input, shape index: {}]
  %s4 = inlined_call_operand.vmem [shape: f32[64,1], index: 4, kind: input, shape index: {}]
  %s5 = inlined_call_operand.vmem [shape: f32[4,64], index: 5, kind: input, shape index: {}]
  %s6 = inlined_call_operand.vmem [shape: f32[4,1], index: 6, kind: input, shape index: {}]
  %s7 = inlined_call_operand.hbm [shape: f32[4,256], index: 7, kind: output, shape index: {}]
  %s8 = sld [smem:[#allocation0]]
  $region61: #{tpu_custom_call.1} parent=0
    _
  %s10 = ssub.s32 1, %s8
  %s11 = scalar_select 0, %s10, %s8
  $region1: #{tpu_custom_call.1} parent=0
    #allocation2 [shape = 'u8[4096]{0}', space=vmem, size = 0x1000, scoped, tag = 'output window, operand 0']
    #allocation3 [shape = 's32[2]{0}', space=sflag, size = 0x8, scoped, tag = 'scoped memory for tpu_custom_call.1']
    %12 = vsyncpa [#allocation3], 0
    %s13 = scalar_lea.sflag [#allocation3], 1
    %14 = vsyncpa %s13, 0
    loop: start=0, step=1, limit=4
    $region2: #{tpu_custom_call.1} parent=1 // loop_pre_header
      _
    $region3: #{tpu_custom_call.1} parent=1 // loop_header
      %s16 = sphi 0, %s20
      %p17 = scmp.ge.s32.totalorder %s16, 4
      %s26 = sphi 0, %s28
      %s29 = sphi 0, %s26
      %s30 = sphi 0, %s29
      %s46 = sphi 0, %s30
      %s50 = sphi 0, %s50
      %s52 = sphi 0, %s50
      %s53 = sphi 0, %s52
      %s67 = sphi 0, %s53
      %s71 = sphi 0, %s71
      %s73 = sphi 0, %s71
      %s74 = sphi 0, %s73
      %s88 = sphi 0, %s74
      %s92 = sphi 0, %s92
      %s94 = sphi 0, %s92
      %s95 = sphi 0, %s94
      %s109 = sphi 0, %s95
      %s113 = sphi 0, %s113
      %s115 = sphi 0, %s113
      %s116 = sphi 0, %s115
      %s130 = sphi 0, %s116
      %s134 = sphi 0, %s134
      %s136 = sphi 0, %s134
      %s137 = sphi 0, %s136
      %s151 = sphi 0, %s137
      %s155 = sphi 0, %s155
      %s157 = sphi 0, %s155
      %s158 = sphi 0, %s157
      %s172 = sphi 0, %s158
      %s178 = sphi 0, %s180
      %s181 = sphi 0, %s178
      %s182 = sphi 0, %s181
      %s198 = sphi 0, %s182
    $region4: #{tpu_custom_call.1} parent=1 // loop_header_branch
      %19 = sbr.rel (%p17) target = $region8
    $region5: #{tpu_custom_call.1} parent=1 // loop_body
      %s21 = ssub.s32 %s16, 1
      %s22 = ssub.s32 %s16, 2
      %s23 = sadd.s32 %s16, 1
      %s24 = ssub.s32 %s16, %s23
      %p25 = scmp.eq.s32.totalorder %s24, 0
      %s27 = sadd.s32 %s26, 1
      %s28 = scalar_select %p25, %s26, %s27
      %p31 = pneg %p25
      %p32 = scmp.eq.s32.totalorder %s16, 1
      %p33 = por %p31, %p32
      %p34 = scmp.ne.s32.totalorder %s26, %s29
      %p35 = scmp.eq.s32.totalorder %s16, 0
      %p36 = por %p34, %p35
      %p37 = scmp.ne.s32.totalorder %s26, %s29
      %p38 = scmp.eq.s32.totalorder %s21, 1
      %p39 = por %p37, %p38
      %p40 = scmp.ne.s32.totalorder %s29, %s30
      %p41 = scmp.eq.s32.totalorder %s21, 0
      %p42 = por %p40, %p41
      %p43 = scmp.ne.s32.totalorder %s29, %s30
      %p44 = scmp.eq.s32.totalorder %s22, 1
      %p45 = por %p43, %p44
      %p47 = scmp.ne.s32.totalorder %s30, %s46
      %p48 = scmp.eq.s32.totalorder %s22, 0
      %p49 = por %p47, %p48
      %s51 = sadd.s32 %s50, 1
      %p54 = scmp.eq.s32.totalorder %s16, 1
      %p55 = scmp.ne.s32.totalorder %s50, %s52
      %p56 = scmp.eq.s32.totalorder %s16, 0
      %p57 = por %p55, %p56
      %p58 = scmp.ne.s32.totalorder %s50, %s52
      %p59 = scmp.eq.s32.totalorder %s21, 1
      %p60 = por %p58, %p59
      %p61 = scmp.ne.s32.totalorder %s52, %s53
      %p62 = scmp.eq.s32.totalorder %s21, 0
      %p63 = por %p61, %p62
      %p64 = scmp.ne.s32.totalorder %s52, %s53
      %p65 = scmp.eq.s32.totalorder %s22, 1
      %p66 = por %p64, %p65
      %p68 = scmp.ne.s32.totalorder %s53, %s67
      %p69 = scmp.eq.s32.totalorder %s22, 0
      %p70 = por %p68, %p69
      %s72 = sadd.s32 %s71, 1
      %p75 = scmp.eq.s32.totalorder %s16, 1
      %p76 = scmp.ne.s32.totalorder %s71, %s73
      %p77 = scmp.eq.s32.totalorder %s16, 0
      %p78 = por %p76, %p77
      %p79 = scmp.ne.s32.totalorder %s71, %s73
      %p80 = scmp.eq.s32.totalorder %s21, 1
      %p81 = por %p79, %p80
      %p82 = scmp.ne.s32.totalorder %s73, %s74
      %p83 = scmp.eq.s32.totalorder %s21, 0
      %p84 = por %p82, %p83
      %p85 = scmp.ne.s32.totalorder %s73, %s74
      %p86 = scmp.eq.s32.totalorder %s22, 1
      %p87 = por %p85, %p86
      %p89 = scmp.ne.s32.totalorder %s74, %s88
      %p90 = scmp.eq.s32.totalorder %s22, 0
      %p91 = por %p89, %p90
      %s93 = sadd.s32 %s92, 1
      %p96 = scmp.eq.s32.totalorder %s16, 1
      %p97 = scmp.ne.s32.totalorder %s92, %s94
      %p98 = scmp.eq.s32.totalorder %s16, 0
      %p99 = por %p97, %p98
      %p100 = scmp.ne.s32.totalorder %s92, %s94
      %p101 = scmp.eq.s32.totalorder %s21, 1
      %p102 = por %p100, %p101
      %p103 = scmp.ne.s32.totalorder %s94, %s95
      %p104 = scmp.eq.s32.totalorder %s21, 0
      %p105 = por %p103, %p104
      %p106 = scmp.ne.s32.totalorder %s94, %s95
      %p107 = scmp.eq.s32.totalorder %s22, 1
      %p108 = por %p106, %p107
      %p110 = scmp.ne.s32.totalorder %s95, %s109
      %p111 = scmp.eq.s32.totalorder %s22, 0
      %p112 = por %p110, %p111
      %s114 = sadd.s32 %s113, 1
      %p117 = scmp.eq.s32.totalorder %s16, 1
      %p118 = scmp.ne.s32.totalorder %s113, %s115
      %p119 = scmp.eq.s32.totalorder %s16, 0
      %p120 = por %p118, %p119
      %p121 = scmp.ne.s32.totalorder %s113, %s115
      %p122 = scmp.eq.s32.totalorder %s21, 1
      %p123 = por %p121, %p122
      %p124 = scmp.ne.s32.totalorder %s115, %s116
      %p125 = scmp.eq.s32.totalorder %s21, 0
      %p126 = por %p124, %p125
      %p127 = scmp.ne.s32.totalorder %s115, %s116
      %p128 = scmp.eq.s32.totalorder %s22, 1
      %p129 = por %p127, %p128
      %p131 = scmp.ne.s32.totalorder %s116, %s130
      %p132 = scmp.eq.s32.totalorder %s22, 0
      %p133 = por %p131, %p132
      %s135 = sadd.s32 %s134, 1
      %p138 = scmp.eq.s32.totalorder %s16, 1
      %p139 = scmp.ne.s32.totalorder %s134, %s136
      %p140 = scmp.eq.s32.totalorder %s16, 0
      %p141 = por %p139, %p140
      %p142 = scmp.ne.s32.totalorder %s134, %s136
      %p143 = scmp.eq.s32.totalorder %s21, 1
      %p144 = por %p142, %p143
      %p145 = scmp.ne.s32.totalorder %s136, %s137
      %p146 = scmp.eq.s32.totalorder %s21, 0
      %p147 = por %p145, %p146
      %p148 = scmp.ne.s32.totalorder %s136, %s137
      %p149 = scmp.eq.s32.totalorder %s22, 1
      %p150 = por %p148, %p149
      %p152 = scmp.ne.s32.totalorder %s137, %s151
      %p153 = scmp.eq.s32.totalorder %s22, 0
      %p154 = por %p152, %p153
      %s156 = sadd.s32 %s155, 1
      %p159 = scmp.eq.s32.totalorder %s16, 1
      %p160 = scmp.ne.s32.totalorder %s155, %s157
      %p161 = scmp.eq.s32.totalorder %s16, 0
      %p162 = por %p160, %p161
      %p163 = scmp.ne.s32.totalorder %s155, %s157
      %p164 = scmp.eq.s32.totalorder %s21, 1
      %p165 = por %p163, %p164
      %p166 = scmp.ne.s32.totalorder %s157, %s158
      %p167 = scmp.eq.s32.totalorder %s21, 0
      %p168 = por %p166, %p167
      %p169 = scmp.ne.s32.totalorder %s157, %s158
      %p170 = scmp.eq.s32.totalorder %s22, 1
      %p171 = por %p169, %p170
      %p173 = scmp.ne.s32.totalorder %s158, %s172
      %p174 = scmp.eq.s32.totalorder %s22, 0
      %p175 = por %p173, %p174
      %s176 = ssub.s32 %s16, %s23
      %p177 = scmp.eq.s32.totalorder %s176, 0
      %s179 = sadd.s32 %s178, 1
      %s180 = scalar_select %p177, %s178, %s179
      %p183 = pneg %p177
      %p184 = scmp.eq.s32.totalorder %s16, 1
      %p185 = por %p183, %p184
      %p186 = scmp.ne.s32.totalorder %s178, %s181
      %p187 = scmp.eq.s32.totalorder %s16, 0
      %p188 = por %p186, %p187
      %p189 = scmp.ne.s32.totalorder %s178, %s181
      %p190 = scmp.eq.s32.totalorder %s21, 1
      %p191 = por %p189, %p190
      %p192 = scmp.ne.s32.totalorder %s181, %s182
      %p193 = scmp.eq.s32.totalorder %s21, 0
      %p194 = por %p192, %p193
      %p195 = scmp.ne.s32.totalorder %s181, %s182
      %p196 = scmp.eq.s32.totalorder %s22, 1
      %p197 = por %p195, %p196
      %p199 = scmp.ne.s32.totalorder %s182, %s198
      %p200 = scmp.eq.s32.totalorder %s22, 0
      %p201 = por %p199, %p200
      %p202 = scmp.le.s32.totalorder 1, %s16
      %p203 = scmp.lt.s32.totalorder %s16, 3
      %p204 = pnand %p202, %p203
      %p205 = pneg %p204
      // Predicated region
      $region9: #{tpu_custom_call.1} parent=5 // pred_check
        _
      $region10: #{tpu_custom_call.1} parent=5 // pred_check_branch
        %207 = sbr.rel (%p204) target = $region12
      $region11: #{tpu_custom_call.1} parent=5 // pred_region
        %s208 = ssub.s32 %s16, 1
        // Predicated region
        $region13: #{tpu_custom_call.1} parent=11 // pred_check
          %p209 = pneg %p63
        $region14: #{tpu_custom_call.1} parent=11 // pred_check_branch
          %211 = sbr.rel (%p209) target = $region16
        $region15: #{tpu_custom_call.1} parent=11 // pred_region
          _
        $region16: #{tpu_custom_call.1} parent=11 // pred_fallthru
          _
        // Predicated region
        $region17: #{tpu_custom_call.1} parent=11 // pred_check
          %p212 = pneg %p84
        $region18: #{tpu_custom_call.1} parent=11 // pred_check_branch
          %214 = sbr.rel (%p212) target = $region20
        $region19: #{tpu_custom_call.1} parent=11 // pred_region
          _
        $region20: #{tpu_custom_call.1} parent=11 // pred_fallthru
          _
        // Predicated region
        $region21: #{tpu_custom_call.1} parent=11 // pred_check
          %p215 = pneg %p105
        $region22: #{tpu_custom_call.1} parent=11 // pred_check_branch
          %217 = sbr.rel (%p215) target = $region24
        $region23: #{tpu_custom_call.1} parent=11 // pred_region
          _
        $region24: #{tpu_custom_call.1} parent=11 // pred_fallthru
          _
        // Predicated region
        $region25: #{tpu_custom_call.1} parent=11 // pred_check
          %p218 = pneg %p126
        $region26: #{tpu_custom_call.1} parent=11 // pred_check_branch
          %220 = sbr.rel (%p218) target = $region28
        $region27: #{tpu_custom_call.1} parent=11 // pred_region
          _
        $region28: #{tpu_custom_call.1} parent=11 // pred_fallthru
          _
        // Predicated region
        $region29: #{tpu_custom_call.1} parent=11 // pred_check
          %p221 = pneg %p147
        $region30: #{tpu_custom_call.1} parent=11 // pred_check_branch
          %223 = sbr.rel (%p221) target = $region32
        $region31: #{tpu_custom_call.1} parent=11 // pred_region
          _
        $region32: #{tpu_custom_call.1} parent=11 // pred_fallthru
          _
        // Predicated region
        $region33: #{tpu_custom_call.1} parent=11 // pred_check
          %p224 = pneg %p168
        $region34: #{tpu_custom_call.1} parent=11 // pred_check_branch
          %226 = sbr.rel (%p224) target = $region36
        $region35: #{tpu_custom_call.1} parent=11 // pred_region
          _
        $region36: #{tpu_custom_call.1} parent=11 // pred_fallthru
          _
      $region12: #{tpu_custom_call.1} parent=5 // pred_fallthru
        _
      %p227 = scmp.lt.s32.totalorder %s16, 2
      // Predicated region
      $region37: #{tpu_custom_call.1} parent=5 // pred_check
        %p228 = pneg %p227
      $region38: #{tpu_custom_call.1} parent=5 // pred_check_branch
        %230 = sbr.rel (%p228) target = $region40
      $region39: #{tpu_custom_call.1} parent=5 // pred_region
        // Predicated region
        $region41: #{tpu_custom_call.1} parent=39 // pred_check
          %p231 = pneg %p36
        $region42: #{tpu_custom_call.1} parent=39 // pred_check_branch
          %233 = sbr.rel (%p231) target = $region44
        $region43: #{tpu_custom_call.1} parent=39 // pred_region
          %s234 = smul.u32 16, %s16
          %p235 = scmp.lt.s32.totalorder %s234, 31
          %s236 = scalar_select %p235, %s234, 31
          %s237 = smul.addr %s236, 8
          %s238 = scalar_lea.vmem %s0, %s237
          %s239 = smul.u32 16, %s16
        $region44: #{tpu_custom_call.1} parent=39 // pred_fallthru
          _
      $region40: #{tpu_custom_call.1} parent=5 // pred_fallthru
        _
      %p240 = scmp.le.s32.totalorder 1, %s16
      %p241 = scmp.lt.s32.totalorder %s16, 3
      %p242 = pnand %p240, %p241
      %p243 = pneg %p242
      // Predicated region
      $region45: #{tpu_custom_call.1} parent=5 // pred_check
        _
      $region46: #{tpu_custom_call.1} parent=5 // pred_check_branch
        %245 = sbr.rel (%p242) target = $region48
      $region47: #{tpu_custom_call.1} parent=5 // pred_region
        %s246 = ssub.s32 %s16, 1
        %s247 = smul.u32 16, %s21
        %p248 = scmp.lt.s32.totalorder %s247, 31
        %s249 = scalar_select %p248, %s247, 31
        %s250 = smul.addr %s249, 8
        %s251 = scalar_lea.vmem %s0, %s250
        %p252 = pneg %p42
        %p253 = pneg %p39
        %p254 = pneg %p63
        %p255 = pneg %p60
        %p256 = pneg %p84
        %p257 = pneg %p81
        %p258 = pneg %p105
        %p259 = pneg %p102
        %p260 = pneg %p126
        %p261 = pneg %p123
        %p262 = pneg %p147
        %p263 = pneg %p144
        %p264 = pneg %p168
        %p265 = pneg %p165
        %p266 = pneg %p194
        %p267 = pneg %p191
        %s268 = sand.u32 %s181, 1
        %s269 = scalar_lea.sflag [#allocation3], %s268
        %s270 = sand.u32 %s181, 1
        %s271 = smul.addr %s270, 4
        %s272 = scalar_lea.vmem [#allocation2], %s271
        %s273 = smul.u32 16, %s21
        %p274 = scmp.lt.s32.totalorder %s273, 31
        %s275 = scalar_select %p274, %s273, 31
        %s276 = smul.addr %s275, 8
        %s277 = scalar_lea.vmem %s0, %s276
        %s278 = smul.u32 16, %s21
        %v279 = vld [vmem:[%s277] sm:$0xff]
        %v280 = vld [vmem:[%s277 + $0x8] sm:$0xff]
        %v281 = vld [vmem:[%s277 + $0x10] sm:$0xff]
        %v282 = vld [vmem:[%s277 + $0x18] sm:$0xff]
        %v283 = vld [vmem:[%s277 + $0x20] sm:$0xff]
        %v284 = vld [vmem:[%s277 + $0x28] sm:$0xff]
        %v285 = vld [vmem:[%s277 + $0x30] sm:$0xff]
        %v286 = vld [vmem:[%s277 + $0x38] sm:$0xff]
        %v287 = vld [vmem:[%s277 + $0x40] sm:$0xff]
        %v288 = vld [vmem:[%s277 + $0x48] sm:$0xff]
        %v289 = vld [vmem:[%s277 + $0x50] sm:$0xff]
        %v290 = vld [vmem:[%s277 + $0x58] sm:$0xff]
        %v291 = vld [vmem:[%s277 + $0x60] sm:$0xff]
        %v292 = vld [vmem:[%s277 + $0x68] sm:$0xff]
        %v293 = vld [vmem:[%s277 + $0x70] sm:$0xff]
        %v294 = vld [vmem:[%s277 + $0x78] sm:$0xff]
        %v295 = vld [vmem:[%s1] sm:$0xff]
        %v296 = vld [vmem:[%s1 + $0x8] sm:$0xff]
        %v297 = vld [vmem:[%s1 + $0x10] sm:$0xff]
        %v298 = vld [vmem:[%s1 + $0x18] sm:$0xff]
        %v299 = vld [vmem:[%s1 + $0x20] sm:$0xff]
        %v300 = vld [vmem:[%s1 + $0x28] sm:$0xff]
        %v301 = vld [vmem:[%s1 + $0x30] sm:$0xff]
        %v302 = vld [vmem:[%s1 + $0x38] sm:$0xff]
        %v303 = vld [vmem:[%s2] sm:$0xff]
        %v304 = vld [vmem:[%s2 + $0x8] sm:$0xff]
        %v305 = vld [vmem:[%s2 + $0x10] sm:$0xff]
        %v306 = vld [vmem:[%s2 + $0x18] sm:$0xff]
        %v307 = vld [vmem:[%s2 + $0x20] sm:$0xff]
        %v308 = vld [vmem:[%s2 + $0x28] sm:$0xff]
        %v309 = vld [vmem:[%s2 + $0x30] sm:$0xff]
        %v310 = vld [vmem:[%s2 + $0x38] sm:$0xff]
        %312 = vset.pattern.permute.xlu0 0
        %313 = vperm.xlu0 %312, %v303
        %v314 = vpop.permute.xlu0 %313
        %317 = vset.pattern.permute.xlu0 0
        %318 = vperm.xlu0 %317, %v304
        %v319 = vpop.permute.xlu0 %318
        %322 = vset.pattern.permute.xlu0 0
        %323 = vperm.xlu0 %322, %v305
        %v324 = vpop.permute.xlu0 %323
        %327 = vset.pattern.permute.xlu0 0
        %328 = vperm.xlu0 %327, %v306
        %v329 = vpop.permute.xlu0 %328
        %332 = vset.pattern.permute.xlu0 0
        %333 = vperm.xlu0 %332, %v307
        %v334 = vpop.permute.xlu0 %333
        %337 = vset.pattern.permute.xlu0 0
        %338 = vperm.xlu0 %337, %v308
        %v339 = vpop.permute.xlu0 %338
        %342 = vset.pattern.permute.xlu0 0
        %343 = vperm.xlu0 %342, %v309
        %v344 = vpop.permute.xlu0 %343
        %347 = vset.pattern.permute.xlu0 0
        %348 = vperm.xlu0 %347, %v310
        %v349 = vpop.permute.xlu0 %348
        %vm351 = vcmask 261120
        %v353 = vsel %vm351, %v295, 0
        %v356 = vsel %vm351, %v296, 0
        %v359 = vsel %vm351, %v297, 0
        %v362 = vsel %vm351, %v298, 0
        %v365 = vsel %vm351, %v299, 0
        %v368 = vsel %vm351, %v300, 0
        %v371 = vsel %vm351, %v301, 0
        %v374 = vsel %vm351, %v302, 0
        %v377 = vsel %vm351, %v279, 0
        %v380 = vsel %vm351, %v280, 0
        %v383 = vsel %vm351, %v281, 0
        %v386 = vsel %vm351, %v282, 0
        %v389 = vsel %vm351, %v283, 0
        %v392 = vsel %vm351, %v284, 0
        %v395 = vsel %vm351, %v285, 0
        %v398 = vsel %vm351, %v286, 0
        %v401 = vsel %vm351, %v287, 0
        %v404 = vsel %vm351, %v288, 0
        %v407 = vsel %vm351, %v289, 0
        %v410 = vsel %vm351, %v290, 0
        %v413 = vsel %vm351, %v291, 0
        %v416 = vsel %vm351, %v292, 0
        %v419 = vsel %vm351, %v293, 0
        %v422 = vsel %vm351, %v294, 0
        %424 = vmatprep.subr.mxu0 0.0
        %425 = vmatpush1.xpose.msra.mxu0 %v422
        %426 = vmatprep.subr.mxu0 0.0
        %427 = vmatpush1.xpose.msra.mxu0 %v419
        %428 = vmatprep.subr.mxu0 0.0
        %429 = vmatpush1.xpose.msra.mxu0 %v416
        %430 = vmatprep.subr.mxu0 0.0
        %431 = vmatpush1.xpose.msra.mxu0 %v413
        %432 = vmatprep.subr.mxu0 0.0
        %433 = vmatpush1.xpose.msra.mxu0 %v410
        %434 = vmatprep.subr.mxu0 0.0
        %435 = vmatpush1.xpose.msra.mxu0 %v407
        %436 = vmatprep.subr.mxu0 0.0
        %437 = vmatpush1.xpose.msra.mxu0 %v404
        %438 = vmatprep.subr.mxu0 0.0
        %439 = vmatpush1.xpose.msra.mxu0 %v401
        %440 = vmatprep.subr.mxu0 0.0
        %441 = vmatpush1.xpose.msra.mxu0 %v398
        %442 = vmatprep.subr.mxu0 0.0
        %443 = vmatpush1.xpose.msra.mxu0 %v395
        %444 = vmatprep.subr.mxu0 0.0
        %445 = vmatpush1.xpose.msra.mxu0 %v392
        %446 = vmatprep.subr.mxu0 0.0
        %447 = vmatpush1.xpose.msra.mxu0 %v389
        %448 = vmatprep.subr.mxu0 0.0
        %449 = vmatpush1.xpose.msra.mxu0 %v386
        %450 = vmatprep.subr.mxu0 0.0
        %451 = vmatpush1.xpose.msra.mxu0 %v383
        %452 = vmatprep.subr.mxu0 0.0
        %453 = vmatpush1.xpose.msra.mxu0 %v380
        %454 = vmatprep.subr.mxu0 0.0
        %455 = vmatpush1.xpose.msra.mxu0 %v377
        %456 = vmatprep.subr.mxu0 0.0
        %457 = vmatpush2.xpose.msra.mxu0 0.0
        %458 = vmatprep.subr.mxu0 0.0
        %459 = vmatpush2.xpose.msra.mxu0 0.0
        %460 = vmatprep.subr.mxu0 0.0
        %461 = vmatpush2.xpose.msra.mxu0 0.0
        %462 = vmatprep.subr.mxu0 0.0
        %463 = vmatpush2.xpose.msra.mxu0 0.0
        %464 = vmatprep.subr.mxu0 0.0
        %465 = vmatpush2.xpose.msra.mxu0 0.0
        %466 = vmatprep.subr.mxu0 0.0
        %467 = vmatpush2.xpose.msra.mxu0 0.0
        %468 = vmatprep.subr.mxu0 0.0
        %469 = vmatpush2.xpose.msra.mxu0 0.0
        %470 = vmatprep.subr.mxu0 0.0
        %471 = vmatpush2.xpose.msra.mxu0 0.0
        %472 = vmatprep.subr.mxu0 0.0
        %473 = vmatpush2.xpose.msra.mxu0 0.0
        %474 = vmatprep.subr.mxu0 0.0
        %475 = vmatpush2.xpose.msra.mxu0 0.0
        %476 = vmatprep.subr.mxu0 0.0
        %477 = vmatpush2.xpose.msra.mxu0 0.0
        %478 = vmatprep.subr.mxu0 0.0
        %479 = vmatpush2.xpose.msra.mxu0 0.0
        %480 = vmatprep.subr.mxu0 0.0
        %481 = vmatpush2.xpose.msra.mxu0 0.0
        %482 = vmatprep.subr.mxu0 0.0
        %483 = vmatpush2.xpose.msra.mxu0 0.0
        %484 = vmatprep.subr.mxu0 0.0
        %485 = vmatpush2.xpose.msra.mxu0 0.0
        %486 = vmatprep.subr.mxu0 0.0
        %487 = vmatpush2.xpose.msra.mxu0 0.0
        %488 = vmatprep.mubr.f32.mxu0 0.0
        %489 = vmatmul.mubr.f32.gmra.mxu0 %v353
        %v490 = vpop.f32.mrf.mxu0
        %v491 = vadd.f32 %v314, %v490
        %v492 = vpop.f32.mrf.mxu0
        %493 = vmatprep.mubr.f32.mxu0 0.0
        %494 = vmatmul.mubr.f32.gmra.mxu0 %v356
        %v495 = vpop.f32.mrf.mxu0
        %v496 = vadd.f32 %v319, %v495
        %v497 = vpop.f32.mrf.mxu0
        %498 = vmatprep.mubr.f32.mxu0 0.0
        %499 = vmatmul.mubr.f32.gmra.mxu0 %v359
        %v500 = vpop.f32.mrf.mxu0
        %v501 = vadd.f32 %v324, %v500
        %v502 = vpop.f32.mrf.mxu0
        %503 = vmatprep.mubr.f32.mxu0 0.0
        %504 = vmatmul.mubr.f32.gmra.mxu0 %v362
        %v505 = vpop.f32.mrf.mxu0
        %v506 = vadd.f32 %v329, %v505
        %v507 = vpop.f32.mrf.mxu0
        %508 = vmatprep.mubr.f32.mxu0 0.0
        %509 = vmatmul.mubr.f32.gmra.mxu0 %v365
        %v510 = vpop.f32.mrf.mxu0
        %v511 = vadd.f32 %v334, %v510
        %v512 = vpop.f32.mrf.mxu0
        %513 = vmatprep.mubr.f32.mxu0 0.0
        %514 = vmatmul.mubr.f32.gmra.mxu0 %v368
        %v515 = vpop.f32.mrf.mxu0
        %v516 = vadd.f32 %v339, %v515
        %v517 = vpop.f32.mrf.mxu0
        %518 = vmatprep.mubr.f32.mxu0 0.0
        %519 = vmatmul.mubr.f32.gmra.mxu0 %v371
        %v520 = vpop.f32.mrf.mxu0
        %v521 = vadd.f32 %v344, %v520
        %v522 = vpop.f32.mrf.mxu0
        %523 = vmatprep.mubr.f32.mxu0 0.0
        %524 = vmatmul.mubr.f32.gmra.mxu0 %v374
        %v525 = vpop.f32.mrf.mxu0
        %v526 = vadd.f32 %v349, %v525
        %v527 = vpop.f32.mrf.mxu0
        %528 = vdwg.mxu0
        %v529 = vtanh.pop %v491
        %v530 = vtanh.pop %v496
        %v531 = vtanh.pop %v501
        %v532 = vtanh.pop %v506
        %v533 = vtanh.pop %v511
        %v534 = vtanh.pop %v516
        %v535 = vtanh.pop %v521
        %v536 = vtanh.pop %v526
        %v537 = vld [vmem:[%s3] sm:$0xff]
        %v538 = vld [vmem:[%s3 + $0x8] sm:$0xff]
        %v539 = vld [vmem:[%s3 + $0x10] sm:$0xff]
        %v540 = vld [vmem:[%s3 + $0x18] sm:$0xff]
        %v541 = vld [vmem:[%s3 + $0x20] sm:$0xff]
        %v542 = vld [vmem:[%s3 + $0x28] sm:$0xff]
        %v543 = vld [vmem:[%s3 + $0x30] sm:$0xff]
        %v544 = vld [vmem:[%s3 + $0x38] sm:$0xff]
        %v545 = vld [vmem:[%s4] sm:$0xff]
        %v546 = vld [vmem:[%s4 + $0x8] sm:$0xff]
        %v547 = vld [vmem:[%s4 + $0x10] sm:$0xff]
        %v548 = vld [vmem:[%s4 + $0x18] sm:$0xff]
        %v549 = vld [vmem:[%s4 + $0x20] sm:$0xff]
        %v550 = vld [vmem:[%s4 + $0x28] sm:$0xff]
        %v551 = vld [vmem:[%s4 + $0x30] sm:$0xff]
        %v552 = vld [vmem:[%s4 + $0x38] sm:$0xff]
        %554 = vset.pattern.permute.xlu0 0
        %555 = vperm.xlu0 %554, %v545
        %v556 = vpop.permute.xlu0 %555
        %559 = vset.pattern.permute.xlu0 0
        %560 = vperm.xlu0 %559, %v546
        %v561 = vpop.permute.xlu0 %560
        %564 = vset.pattern.permute.xlu0 0
        %565 = vperm.xlu0 %564, %v547
        %v566 = vpop.permute.xlu0 %565
        %569 = vset.pattern.permute.xlu0 0
        %570 = vperm.xlu0 %569, %v548
        %v571 = vpop.permute.xlu0 %570
        %574 = vset.pattern.permute.xlu0 0
        %575 = vperm.xlu0 %574, %v549
        %v576 = vpop.permute.xlu0 %575
        %579 = vset.pattern.permute.xlu0 0
        %580 = vperm.xlu0 %579, %v550
        %v581 = vpop.permute.xlu0 %580
        %584 = vset.pattern.permute.xlu0 0
        %585 = vperm.xlu0 %584, %v551
        %v586 = vpop.permute.xlu0 %585
        %589 = vset.pattern.permute.xlu0 0
        %590 = vperm.xlu0 %589, %v552
        %v591 = vpop.permute.xlu0 %590
        %vm593 = vcmask 523264
        %v595 = vsel %vm593, %v537, 0
        %v598 = vsel %vm593, %v538, 0
        %v601 = vsel %vm593, %v539, 0
        %v604 = vsel %vm593, %v540, 0
        %v607 = vsel %vm593, %v541, 0
        %v610 = vsel %vm593, %v542, 0
        %v613 = vsel %vm593, %v543, 0
        %v616 = vsel %vm593, %v544, 0
        %618 = vmatprep.subr.mxu0 0.0
        %619 = vmatpush1.msra.mxu0 0.0
        %620 = vmatprep.subr.mxu0 0.0
        %621 = vmatpush1.msra.mxu0 0.0
        %622 = vmatprep.subr.mxu0 0.0
        %623 = vmatpush1.msra.mxu0 0.0
        %624 = vmatprep.subr.mxu0 0.0
        %625 = vmatpush1.msra.mxu0 0.0
        %626 = vmatprep.subr.mxu0 0.0
        %627 = vmatpush1.msra.mxu0 0.0
        %628 = vmatprep.subr.mxu0 0.0
        %629 = vmatpush1.msra.mxu0 0.0
        %630 = vmatprep.subr.mxu0 0.0
        %631 = vmatpush1.msra.mxu0 0.0
        %632 = vmatprep.subr.mxu0 0.0
        %633 = vmatpush1.msra.mxu0 0.0
        %634 = vmatprep.subr.mxu0 0.0
        %635 = vmatpush1.msra.mxu0 %v536
        %636 = vmatprep.subr.mxu0 0.0
        %637 = vmatpush1.msra.mxu0 %v535
        %638 = vmatprep.subr.mxu0 0.0
        %639 = vmatpush1.msra.mxu0 %v534
        %640 = vmatprep.subr.mxu0 0.0
        %641 = vmatpush1.msra.mxu0 %v533
        %642 = vmatprep.subr.mxu0 0.0
        %643 = vmatpush1.msra.mxu0 %v532
        %644 = vmatprep.subr.mxu0 0.0
        %645 = vmatpush1.msra.mxu0 %v531
        %646 = vmatprep.subr.mxu0 0.0
        %647 = vmatpush1.msra.mxu0 %v530
        %648 = vmatprep.subr.mxu0 0.0
        %649 = vmatpush1.msra.mxu0 %v529
        %650 = vmatprep.subr.mxu0 0.0
        %651 = vmatpush2.msra.mxu0 0.0
        %652 = vmatprep.subr.mxu0 0.0
        %653 = vmatpush2.msra.mxu0 0.0
        %654 = vmatprep.subr.mxu0 0.0
        %655 = vmatpush2.msra.mxu0 0.0
        %656 = vmatprep.subr.mxu0 0.0
        %657 = vmatpush2.msra.mxu0 0.0
        %658 = vmatprep.subr.mxu0 0.0
        %659 = vmatpush2.msra.mxu0 0.0
        %660 = vmatprep.subr.mxu0 0.0
        %661 = vmatpush2.msra.mxu0 0.0
        %662 = vmatprep.subr.mxu0 0.0
        %663 = vmatpush2.msra.mxu0 0.0
        %664 = vmatprep.subr.mxu0 0.0
        %665 = vmatpush2.msra.mxu0 0.0
        %666 = vmatprep.subr.mxu0 0.0
        %667 = vmatpush2.msra.mxu0 0.0
        %668 = vmatprep.subr.mxu0 0.0
        %669 = vmatpush2.msra.mxu0 0.0
        %670 = vmatprep.subr.mxu0 0.0
        %671 = vmatpush2.msra.mxu0 0.0
        %672 = vmatprep.subr.mxu0 0.0
        %673 = vmatpush2.msra.mxu0 0.0
        %674 = vmatprep.subr.mxu0 0.0
        %675 = vmatpush2.msra.mxu0 0.0
        %676 = vmatprep.subr.mxu0 0.0
        %677 = vmatpush2.msra.mxu0 0.0
        %678 = vmatprep.subr.mxu0 0.0
        %679 = vmatpush2.msra.mxu0 0.0
        %680 = vmatprep.subr.mxu0 0.0
        %681 = vmatpush2.msra.mxu0 0.0
        %682 = vmatprep.mubr.f32.mxu0 0.0
        %683 = vmatmul.mubr.f32.gmra.mxu0 %v595
        %v684 = vpop.f32.mrf.mxu0
        %v685 = vadd.f32 %v556, %v684
        %v686 = vpop.f32.mrf.mxu0
        %687 = vmatprep.mubr.f32.mxu0 0.0
        %688 = vmatmul.mubr.f32.gmra.mxu0 %v598
        %v689 = vpop.f32.mrf.mxu0
        %v690 = vadd.f32 %v561, %v689
        %v691 = vpop.f32.mrf.mxu0
        %692 = vmatprep.mubr.f32.mxu0 0.0
        %693 = vmatmul.mubr.f32.gmra.mxu0 %v601
        %v694 = vpop.f32.mrf.mxu0
        %v695 = vadd.f32 %v566, %v694
        %v696 = vpop.f32.mrf.mxu0
        %697 = vmatprep.mubr.f32.mxu0 0.0
        %698 = vmatmul.mubr.f32.gmra.mxu0 %v604
        %v699 = vpop.f32.mrf.mxu0
        %v700 = vadd.f32 %v571, %v699
        %v701 = vpop.f32.mrf.mxu0
        %702 = vmatprep.mubr.f32.mxu0 0.0
        %703 = vmatmul.mubr.f32.gmra.mxu0 %v607
        %v704 = vpop.f32.mrf.mxu0
        %v705 = vadd.f32 %v576, %v704
        %v706 = vpop.f32.mrf.mxu0
        %707 = vmatprep.mubr.f32.mxu0 0.0
        %708 = vmatmul.mubr.f32.gmra.mxu0 %v610
        %v709 = vpop.f32.mrf.mxu0
        %v710 = vadd.f32 %v581, %v709
        %v711 = vpop.f32.mrf.mxu0
        %712 = vmatprep.mubr.f32.mxu0 0.0
        %713 = vmatmul.mubr.f32.gmra.mxu0 %v613
        %v714 = vpop.f32.mrf.mxu0
        %v715 = vadd.f32 %v586, %v714
        %v716 = vpop.f32.mrf.mxu0
        %717 = vmatprep.mubr.f32.mxu0 0.0
        %718 = vmatmul.mubr.f32.gmra.mxu0 %v616
        %v719 = vpop.f32.mrf.mxu0
        %v720 = vadd.f32 %v591, %v719
        %v721 = vpop.f32.mrf.mxu0
        %722 = vdwg.mxu0
        %v723 = vtanh.pop %v685
        %v724 = vtanh.pop %v690
        %v725 = vtanh.pop %v695
        %v726 = vtanh.pop %v700
        %v727 = vtanh.pop %v705
        %v728 = vtanh.pop %v710
        %v729 = vtanh.pop %v715
        %v730 = vtanh.pop %v720
        %v731 = vld [vmem:[%s5] sm:$0xf]
        %v732 = vld [vmem:[%s6] sm:$0xf]
        %734 = vset.pattern.permute.xlu0 0
        %735 = vperm.xlu0 %734, %v732
        %v736 = vpop.permute.xlu0 %735
        %v739 = vsel %vm593, %v731, 0
        %741 = vmatprep.subr.mxu0 0.0
        %742 = vmatpush1.msra.mxu0 0.0
        %743 = vmatprep.subr.mxu0 0.0
        %744 = vmatpush1.msra.mxu0 0.0
        %745 = vmatprep.subr.mxu0 0.0
        %746 = vmatpush1.msra.mxu0 0.0
        %747 = vmatprep.subr.mxu0 0.0
        %748 = vmatpush1.msra.mxu0 0.0
        %749 = vmatprep.subr.mxu0 0.0
        %750 = vmatpush1.msra.mxu0 0.0
        %751 = vmatprep.subr.mxu0 0.0
        %752 = vmatpush1.msra.mxu0 0.0
        %753 = vmatprep.subr.mxu0 0.0
        %754 = vmatpush1.msra.mxu0 0.0
        %755 = vmatprep.subr.mxu0 0.0
        %756 = vmatpush1.msra.mxu0 0.0
        %757 = vmatprep.subr.mxu0 0.0
        %758 = vmatpush1.msra.mxu0 %v730
        %759 = vmatprep.subr.mxu0 0.0
        %760 = vmatpush1.msra.mxu0 %v729
        %761 = vmatprep.subr.mxu0 0.0
        %762 = vmatpush1.msra.mxu0 %v728
        %763 = vmatprep.subr.mxu0 0.0
        %764 = vmatpush1.msra.mxu0 %v727
        %765 = vmatprep.subr.mxu0 0.0
        %766 = vmatpush1.msra.mxu0 %v726
        %767 = vmatprep.subr.mxu0 0.0
        %768 = vmatpush1.msra.mxu0 %v725
        %769 = vmatprep.subr.mxu0 0.0
        %770 = vmatpush1.msra.mxu0 %v724
        %771 = vmatprep.subr.mxu0 0.0
        %772 = vmatpush1.msra.mxu0 %v723
        %773 = vmatprep.subr.mxu0 0.0
        %774 = vmatpush2.msra.mxu0 0.0
        %775 = vmatprep.subr.mxu0 0.0
        %776 = vmatpush2.msra.mxu0 0.0
        %777 = vmatprep.subr.mxu0 0.0
        %778 = vmatpush2.msra.mxu0 0.0
        %779 = vmatprep.subr.mxu0 0.0
        %780 = vmatpush2.msra.mxu0 0.0
        %781 = vmatprep.subr.mxu0 0.0
        %782 = vmatpush2.msra.mxu0 0.0
        %783 = vmatprep.subr.mxu0 0.0
        %784 = vmatpush2.msra.mxu0 0.0
        %785 = vmatprep.subr.mxu0 0.0
        %786 = vmatpush2.msra.mxu0 0.0
        %787 = vmatprep.subr.mxu0 0.0
        %788 = vmatpush2.msra.mxu0 0.0
        %789 = vmatprep.subr.mxu0 0.0
        %790 = vmatpush2.msra.mxu0 0.0
        %791 = vmatprep.subr.mxu0 0.0
        %792 = vmatpush2.msra.mxu0 0.0
        %793 = vmatprep.subr.mxu0 0.0
        %794 = vmatpush2.msra.mxu0 0.0
        %795 = vmatprep.subr.mxu0 0.0
        %796 = vmatpush2.msra.mxu0 0.0
        %797 = vmatprep.subr.mxu0 0.0
        %798 = vmatpush2.msra.mxu0 0.0
        %799 = vmatprep.subr.mxu0 0.0
        %800 = vmatpush2.msra.mxu0 0.0
        %801 = vmatprep.subr.mxu0 0.0
        %802 = vmatpush2.msra.mxu0 0.0
        %803 = vmatprep.subr.mxu0 0.0
        %804 = vmatpush2.msra.mxu0 0.0
        %805 = vmatprep.mubr.f32.mxu0 0.0
        %806 = vmatmul.mubr.f32.gmra.mxu0 %v739
        %v807 = vpop.f32.mrf.mxu0
        %v808 = vadd.f32 %v736, %v807
        %v809 = vpop.f32.mrf.mxu0
        %810 = vdwg.mxu0
        %811 = vst [vmem:[%s272] sm:$0xf] %v808
        %s812 = sand.u32 %s181, 1
        %s813 = scalar_lea.sflag [#allocation3], %s812
        %s814 = sand.u32 %s181, 1
        %s815 = smul.addr %s814, 4
        %s816 = scalar_lea.vmem [#allocation2], %s815
        // Predicated region
        $region49: #{tpu_custom_call.1} parent=47 // pred_check
          %p817 = pneg %p191
        $region50: #{tpu_custom_call.1} parent=47 // pred_check_branch
          %819 = sbr.rel (%p817) target = $region52
        $region51: #{tpu_custom_call.1} parent=47 // pred_region
          %s821 = ssub.s32 64, 64
          %822 = vsyncadd %s813, %s821
          %s823 = smul.addr %s21, 64
          %s824 = scalar_lea.hbm %s7, %s823
          %s826 = sshll.u32 %s816, 4
          %s827 = int_to_ptr.vmem [resolvable:$true] %s826
          %829 = dma.vmem_to_hbm [thread:$0]  %s827, 64, %s824, %s813
        $region52: #{tpu_custom_call.1} parent=47 // pred_fallthru
          _
      $region48: #{tpu_custom_call.1} parent=5 // pred_fallthru
        _
      %p830 = scmp.le.s32.totalorder 2, %s16
      // Predicated region
      $region53: #{tpu_custom_call.1} parent=5 // pred_check
        %p831 = pneg %p830
      $region54: #{tpu_custom_call.1} parent=5 // pred_check_branch
        %833 = sbr.rel (%p831) target = $region56
      $region55: #{tpu_custom_call.1} parent=5 // pred_region
        %s834 = ssub.s32 %s16, 2
        // Predicated region
        $region57: #{tpu_custom_call.1} parent=55 // pred_check
          %p835 = pneg %p197
        $region58: #{tpu_custom_call.1} parent=55 // pred_check_branch
          %837 = sbr.rel (%p835) target = $region60
        $region59: #{tpu_custom_call.1} parent=55 // pred_region
          %s838 = sand.u32 %s182, 1
          %s839 = scalar_lea.sflag [#allocation3], %s838
          %s840 = sand.u32 %s182, 1
          %s841 = smul.addr %s840, 4
          %s842 = scalar_lea.vmem [#allocation2], %s841
          %843 = dma.done %s839, 64
        $region60: #{tpu_custom_call.1} parent=55 // pred_fallthru
          _
      $region56: #{tpu_custom_call.1} parent=5 // pred_fallthru
        _
    $region6: #{tpu_custom_call.1} parent=1 // loop_footer
      %s20 = sadd.s32 1, %s16
    $region7: #{tpu_custom_call.1} parent=1 // loop_footer_branch
      %15 = sbr.rel target = $region3
    $region8: #{tpu_custom_call.1} parent=1 // loop_exit
      _
    %844 = vsyncpa [#allocation3], 1
    %s845 = scalar_lea.sflag [#allocation3], 1
    %846 = vsyncpa %s845, 1

</llo_original>
